<compile_context>
chip_gen: v6e
topology: v6e:2x2x1
jax: 0.10.0
libtpu: 0.0.40
codegen_flags: <defaults>
</compile_context>

<pallas_src>
import functools

import jax
import jax.numpy as jnp
from jax.experimental import pallas as pl
from jax.experimental.pallas import tpu as pltpu


def mlp_kernel(x_ref, w1_ref, b1_ref, w2_ref, b2_ref, o_ref, acc_ref):
    k = pl.program_id(1)

    @pl.when(k == 0)
    def _():
        acc_ref[...] = jnp.zeros_like(acc_ref)

    # fc1 on this H-tile: (tB, F) @ (F, tH) -> f32 acc, + bias, ReLU.
    h = jnp.dot(x_ref[...], w1_ref[...], preferred_element_type=jnp.float32)
    h = jnp.maximum(h + b1_ref[...], 0.0)

    # fc2 partial sum for this H-tile: (tB, tH) @ (tH, Cp), accumulate in f32.
    acc_ref[...] += jnp.dot(h.astype(w2_ref.dtype), w2_ref[...],
                            preferred_element_type=jnp.float32)

    @pl.when(k == pl.num_programs(1) - 1)
    def _():
        o_ref[...] = (acc_ref[...] + b2_ref[...]).astype(o_ref.dtype)


@functools.partial(jax.jit, static_argnames=("tile_b", "tile_h"))
def mlp_forward(x, w1, b1, w2, b2, *, tile_b=128, tile_h=256):
    """x: (B, ...) flattened to (B, F) like x.view(x.size(0), -1)."""
    B = x.shape[0]
    x2d = x.reshape(B, -1)
    F = x2d.shape[1]
    H = w1.shape[1]
    C = w2.shape[1]

    # Lane-dense output: pad the class dim up to a multiple of 128 lanes.
    Cp = ((C + 127) // 128) * 128
    # Batch tile: multiple of 8 sublanes, capped at tile_b; pad B up to it.
    tB = min(tile_b, ((B + 7) // 8) * 8)
    Bp = pl.cdiv(B, tB) * tB
    # Hidden tile (reduction axis of the second matmul): keep 128-aligned,
    # fall back to the full H if it doesn't divide evenly.
    tH = tile_h if (H % tile_h == 0) else H

    # bf16 inputs halve HBM bytes; accumulation stays f32 inside the kernel.
    x_bf = x2d.astype(jnp.bfloat16)
    xp = x_bf if Bp == B else jnp.zeros((Bp, F), jnp.bfloat16).at[:B].set(x_bf)
    w1b = w1.astype(jnp.bfloat16)
    w2b = w2.astype(jnp.bfloat16)
    w2p = w2b if Cp == C else jnp.zeros((H, Cp), jnp.bfloat16).at[:, :C].set(w2b)
    b1r = b1.reshape(1, H).astype(jnp.float32)
    b2r = b2.reshape(1, C).astype(jnp.float32)
    b2p = b2r if Cp == C else jnp.zeros((1, Cp), jnp.float32).at[:, :C].set(b2r)

    grid = (Bp // tB, H // tH)

    flops = 2 * Bp * (F * H + H * Cp)
    bytes_accessed = (xp.size * 2 + w1b.size * 2 + w2p.size * 2
                      + b1r.size * 4 + b2p.size * 4 + Bp * Cp * 4)

    out = pl.pallas_call(
        mlp_kernel,
        out_shape=jax.ShapeDtypeStruct((Bp, Cp), jnp.float32),
        grid=grid,
        in_specs=[
            pl.BlockSpec((tB, F), lambda b, k: (b, 0)),    # x: per-batch tile
            pl.BlockSpec((F, tH), lambda b, k: (0, k)),    # W1: per-H tile
            pl.BlockSpec((1, tH), lambda b, k: (0, k)),    # b1: per-H tile
            pl.BlockSpec((tH, Cp), lambda b, k: (k, 0)),   # W2: per-H tile
            pl.BlockSpec((1, Cp), lambda b, k: (0, 0)),    # b2: resident
        ],
        out_specs=pl.BlockSpec((tB, Cp), lambda b, k: (b, 0)),
        scratch_shapes=[pltpu.VMEM((tB, Cp), jnp.float32)],
        compiler_params=pltpu.CompilerParams(
            dimension_semantics=("parallel", "arbitrary")),
        cost_estimate=pl.CostEstimate(
            flops=flops, transcendentals=0, bytes_accessed=bytes_accessed),
    )(xp, w1b, b1r, w2p, b2p)

    return out[:B, :C]


def init_params(key, input_size=32 * 32, hidden_size=512, num_classes=10):
    """Deterministic init mimicking nn.Linear's U(-1/sqrt(fan_in), 1/sqrt(fan_in))."""
    k1, k2, k3, k4 = jax.random.split(key, 4)
    bound1 = 1.0 / jnp.sqrt(jnp.float32(input_size))
    bound2 = 1.0 / jnp.sqrt(jnp.float32(hidden_size))
    # stored as (in, out) so the kernel does x @ W directly
    w1 = jax.random.uniform(k1, (input_size, hidden_size), jnp.float32,
                            -bound1, bound1)
    b1 = jax.random.uniform(k2, (hidden_size,), jnp.float32, -bound1, bound1)
    w2 = jax.random.uniform(k3, (hidden_size, num_classes), jnp.float32,
                            -bound2, bound2)
    b2 = jax.random.uniform(k4, (num_classes,), jnp.float32, -bound2, bound2)
    return w1, b1, w2, b2


if __name__ == "__main__":
    key = jax.random.PRNGKey(0)
    kx, kp = jax.random.split(key)

    B, input_size, hidden_size, num_classes = 8, 32 * 32, 512, 10
    # image-like input (B, 1, 32, 32) — forward flattens it to (B, 1024)
    x = jax.random.normal(kx, (B, 1, 32, 32), jnp.float32)
    w1, b1, w2, b2 = init_params(kp, input_size, hidden_size, num_classes)

    out = jax.block_until_ready(mlp_forward(x, w1, b1, w2, b2))

    # reference check in plain JAX (f32); bf16 kernel inputs -> loose tolerance
    x2d = x.reshape(B, -1)
    ref = jnp.maximum(x2d @ w1 + b1, 0.0) @ w2 + b2
    assert out.shape == (B, num_classes)
    assert jnp.allclose(out, ref, atol=3e-2, rtol=3e-2), float(
        jnp.max(jnp.abs(out - ref)))

    print("KERNEL_OK")
</pallas_src>

<mosaic_0001>
module attributes {stable_mosaic.version = 11 : i64} {
  func.func @mlp_kernel(%arg0: i32, %arg1: i32, %arg2: memref<8x1024xbf16, #tpu.memory_space<vmem>>, %arg3: memref<1024x256xbf16, #tpu.memory_space<vmem>>, %arg4: memref<1x256xf32, #tpu.memory_space<vmem>>, %arg5: memref<256x128xbf16, #tpu.memory_space<vmem>>, %arg6: memref<1x128xf32, #tpu.memory_space<vmem>>, %arg7: memref<8x128xf32, #tpu.memory_space<vmem>>, %arg8: memref<8x128xf32, #tpu.memory_space<vmem>>) attributes {dimension_semantics = [#tpu.dimension_semantics<parallel>, #tpu.dimension_semantics<arbitrary>], iteration_bounds = array<i64: 1, 2>, scalar_prefetch = 0 : i64, scratch_operands = 1 : i64, tpu.core_type = #tpu.core_type<tc>, window_params = [{transform_indices = @transform_0, window_bounds = array<i64: 8, 1024>}, {transform_indices = @transform_1, window_bounds = array<i64: 1024, 256>}, {transform_indices = @transform_2, window_bounds = array<i64: 1, 256>}, {transform_indices = @transform_3, window_bounds = array<i64: 256, 128>}, {pipeline_mode = #tpu.pipeline_mode<synchronous>, transform_indices = @transform_4, window_bounds = array<i64: 1, 128>}, {transform_indices = @transform_5, window_bounds = array<i64: 8, 128>}]} {
    %c0_i32 = arith.constant 0 : i32
    %0 = arith.cmpi eq, %arg1, %c0_i32 : i32
    %1 = arith.extui %0 : i1 to i32
    %c0_i32_0 = arith.constant 0 : i32
    %2 = arith.cmpi ne, %1, %c0_i32_0 : i32
    scf.if %2 {
      %cst_15 = arith.constant 0.000000e+00 : f32
      %20 = vector.broadcast %cst_15 : f32 to vector<8x128xf32>
      %c0_16 = arith.constant 0 : index
      %c0_17 = arith.constant 0 : index
      %21 = vector.load %arg8[%c0_16, %c0_17] : memref<8x128xf32, #tpu.memory_space<vmem>>, vector<8x128xf32>
      tpu.vector_store %arg8[%c0_16, %c0_17], %20 {strides = array<i32>} : memref<8x128xf32, #tpu.memory_space<vmem>>, vector<8x128xf32>,
    } else {
    }
    %c0 = arith.constant 0 : index
    %c0_1 = arith.constant 0 : index
    %3 = vector.load %arg2[%c0, %c0_1] : memref<8x1024xbf16, #tpu.memory_space<vmem>>, vector<8x1024xbf16>
    %c0_2 = arith.constant 0 : index
    %c0_3 = arith.constant 0 : index
    %4 = vector.load %arg3[%c0_2, %c0_3] : memref<1024x256xbf16, #tpu.memory_space<vmem>>, vector<1024x256xbf16>
    %cst = arith.constant dense<0.000000e+00> : vector<8x256xf32>
    %5 = tpu.matmul %3, %4, %cst {dimension_numbers = #tpu.dot_dimension_numbers<[1], [0], [0], [1], [0, 0, 1, 1], [], []>} : vector<8x1024xbf16>, vector<1024x256xbf16>, vector<8x256xf32> -> vector<8x256xf32>
    %c0_4 = arith.constant 0 : index
    %c0_5 = arith.constant 0 : index
    %6 = vector.load %arg4[%c0_4, %c0_5] : memref<1x256xf32, #tpu.memory_space<vmem>>, vector<1x256xf32>
    %7 = vector.broadcast %6 : vector<1x256xf32> to vector<8x256xf32>
    %8 = arith.addf %5, %7 : vector<8x256xf32>
    %cst_6 = arith.constant 0.000000e+00 : f32
    %9 = vector.broadcast %cst_6 : f32 to vector<8x256xf32>
    %10 = arith.maximumf %8, %9 : vector<8x256xf32>
    %c0_7 = arith.constant 0 : index
    %c0_8 = arith.constant 0 : index
    %11 = vector.load %arg8[%c0_7, %c0_8] : memref<8x128xf32, #tpu.memory_space<vmem>>, vector<8x128xf32>
    %12 = arith.truncf %10 : vector<8x256xf32> to vector<8x256xbf16>
    %c0_9 = arith.constant 0 : index
    %c0_10 = arith.constant 0 : index
    %13 = vector.load %arg5[%c0_9, %c0_10] : memref<256x128xbf16, #tpu.memory_space<vmem>>, vector<256x128xbf16>
    %cst_11 = arith.constant dense<0.000000e+00> : vector<8x128xf32>
    %14 = tpu.matmul %12, %13, %cst_11 {dimension_numbers = #tpu.dot_dimension_numbers<[1], [0], [0], [1], [0, 0, 1, 1], [], []>} : vector<8x256xbf16>, vector<256x128xbf16>, vector<8x128xf32> -> vector<8x128xf32>
    %15 = arith.addf %11, %14 : vector<8x128xf32>
    %c0_12 = arith.constant 0 : index
    %c0_13 = arith.constant 0 : index
    %16 = vector.load %arg8[%c0_12, %c0_13] : memref<8x128xf32, #tpu.memory_space<vmem>>, vector<8x128xf32>
    tpu.vector_store %arg8[%c0_12, %c0_13], %15 {strides = array<i32>} : memref<8x128xf32, #tpu.memory_space<vmem>>, vector<8x128xf32>,
    %c1_i32 = arith.constant 1 : i32
    %17 = arith.cmpi eq, %arg1, %c1_i32 : i32
    %18 = arith.extui %17 : i1 to i32
    %c0_i32_14 = arith.constant 0 : i32
    %19 = arith.cmpi ne, %18, %c0_i32_14 : i32
    scf.if %19 {
      %c0_15 = arith.constant 0 : index
      %c0_16 = arith.constant 0 : index
      %20 = vector.load %arg8[%c0_15, %c0_16] : memref<8x128xf32, #tpu.memory_space<vmem>>, vector<8x128xf32>
      %c0_17 = arith.constant 0 : index
      %c0_18 = arith.constant 0 : index
      %21 = vector.load %arg6[%c0_17, %c0_18] : memref<1x128xf32, #tpu.memory_space<vmem>>, vector<1x128xf32>
      %22 = vector.broadcast %21 : vector<1x128xf32> to vector<8x128xf32>
      %23 = arith.addf %20, %22 : vector<8x128xf32>
      %c0_19 = arith.constant 0 : index
      %c0_20 = arith.constant 0 : index
      %24 = vector.load %arg7[%c0_19, %c0_20] : memref<8x128xf32, #tpu.memory_space<vmem>>, vector<8x128xf32>
      tpu.vector_store %arg7[%c0_19, %c0_20], %23 {strides = array<i32>} : memref<8x128xf32, #tpu.memory_space<vmem>>, vector<8x128xf32>,
    } else {
    }
    return
  }
  func.func @transform_0(%arg0: i32, %arg1: i32) -> (i32, i32) {
    %c0_i32 = arith.constant 0 : i32
    %c0_i32_0 = arith.constant 0 : i32
    return %arg0, %c0_i32 : i32, i32
  }
  func.func @transform_1(%arg0: i32, %arg1: i32) -> (i32, i32) {
    %c0_i32 = arith.constant 0 : i32
    %c0_i32_0 = arith.constant 0 : i32
    return %c0_i32, %arg1 : i32, i32
  }
  func.func @transform_2(%arg0: i32, %arg1: i32) -> (i32, i32) {
    %c0_i32 = arith.constant 0 : i32
    %c0_i32_0 = arith.constant 0 : i32
    return %c0_i32, %arg1 : i32, i32
  }
  func.func @transform_3(%arg0: i32, %arg1: i32) -> (i32, i32) {
    %c0_i32 = arith.constant 0 : i32
    %c0_i32_0 = arith.constant 0 : i32
    return %arg1, %c0_i32 : i32, i32
  }
  func.func @transform_4(%arg0: i32, %arg1: i32) -> (i32, i32) {
    %c0_i32 = arith.constant 0 : i32
    %c0_i32_0 = arith.constant 0 : i32
    %c0_i32_1 = arith.constant 0 : i32
    return %c0_i32, %c0_i32_0 : i32, i32
  }
  func.func @transform_5(%arg0: i32, %arg1: i32) -> (i32, i32) {
    %c0_i32 = arith.constant 0 : i32
    %c0_i32_0 = arith.constant 0 : i32
    return %arg0, %c0_i32 : i32, i32
  }
}

</mosaic_0001>

<llo_original>
// kernel: mlp_forward.1
$region0: #{mlp_forward.1}
  #allocation0 [shape = 'u32[]', space=smem, size = 0x4, offset = 0x4, fixed_abs, tag = 'smem constant byte address 0x4 - core index']
  #allocation1 [shape = 'u32[144,128]{1,0:T(1,128)}', space=vmem, size = 0x12000, scoped, tag = 'internal scratch']
  #allocation2 [shape = 'f32[8,128]{1,0:T(8,128)}', space=vmem, size = 0x1000, scoped, tag = 'scratch operand']
  %s0 = inlined_call_operand.vmem [shape: bf16[8,1024], index: 0, kind: input, shape index: {}]
  %s1 = inlined_call_operand.vmem [shape: bf16[1024,512], index: 1, kind: input, shape index: {}]
  %s2 = inlined_call_operand.vmem [shape: f32[1,512], index: 2, kind: input, shape index: {}]
  %s3 = inlined_call_operand.vmem [shape: bf16[512,128], index: 3, kind: input, shape index: {}]
  %s4 = inlined_call_operand.vmem [shape: f32[1,128], index: 4, kind: input, shape index: {}]
  %s5 = inlined_call_operand.hbm [shape: f32[8,128], index: 5, kind: output, shape index: {}]
  %s6 = sld [smem:[#allocation0]]
  $region99: #{mlp_forward.1} parent=0
    _
  %s8 = ssub.s32 1, %s6
  %s9 = scalar_select 0, %s8, %s6
  $region1: #{mlp_forward.1} parent=0
    #allocation3 [shape = 'u8[1048576]{0}', space=vmem, size = 0x100000, scoped, tag = 'input window, operand 1']
    #allocation4 [shape = 'u8[4096]{0}', space=vmem, size = 0x1000, scoped, tag = 'output window, operand 0, single buffered']
    #allocation5 [shape = 's32[2]{0}', space=sflag, size = 0x8, scoped, tag = 'scoped memory for mlp_forward.1']
    %10 = vsyncpa [#allocation5], 0
    loop: start=0, step=1, limit=4
    $region2: #{mlp_forward.1} parent=1 // loop_pre_header
      _
    $region3: #{mlp_forward.1} parent=1 // loop_header
      %s12 = sphi 0, %s16
      %p13 = scmp.ge.s32.totalorder %s12, 4
      %s19 = sphi 0, %s31
      %s20 = sphi 0, %s27
      %s21 = sphi 0, %s19
      %s22 = sphi 0, %s20
      %s23 = sphi 0, %s21
      %s24 = sphi 0, %s22
      %s34 = sphi 0, %s36
      %s37 = sphi 0, %s34
      %s38 = sphi 0, %s37
      %s54 = sphi 0, %s38
      %s60 = sphi 0, %s62
      %s63 = sphi 0, %s60
      %s64 = sphi 0, %s63
      %s80 = sphi 0, %s64
      %s86 = sphi 0, %s88
      %s89 = sphi 0, %s86
      %s90 = sphi 0, %s89
      %s106 = sphi 0, %s90
      %s112 = sphi 0, %s114
      %s115 = sphi 0, %s112
      %s116 = sphi 0, %s115
      %s132 = sphi 0, %s116
      %s136 = sphi 0, %s136
      %s138 = sphi 0, %s136
      %s139 = sphi 0, %s138
      %s153 = sphi 0, %s139
      %s159 = sphi 0, %s161
      %s162 = sphi 0, %s159
      %s163 = sphi 0, %s162
      %s179 = sphi 0, %s163
    $region4: #{mlp_forward.1} parent=1 // loop_header_branch
      %15 = sbr.rel (%p13) target = $region8
    $region5: #{mlp_forward.1} parent=1 // loop_body
      %s17 = ssub.s32 %s12, 1
      %s18 = ssub.s32 %s12, 2
      %s25 = sadd.s32 1, %s20
      %p26 = scmp.ge.s32.totalorder %s25, 2
      %s27 = scalar_select %p26, 0, %s25
      %s28 = sadd.s32 1, %s19
      %s29 = scalar_select %p26, %s28, %s19
      %p30 = scmp.ge.s32.totalorder %s29, 1
      %s31 = scalar_select %p30, 0, %s29
      %s32 = ssub.s32 %s19, %s31
      %p33 = scmp.eq.s32.totalorder %s32, 0
      %s35 = sadd.s32 %s34, 1
      %s36 = scalar_select %p33, %s34, %s35
      %p39 = pneg %p33
      %p40 = scmp.eq.s32.totalorder %s12, 1
      %p41 = por %p39, %p40
      %p42 = scmp.ne.s32.totalorder %s34, %s37
      %p43 = scmp.eq.s32.totalorder %s12, 0
      %p44 = por %p42, %p43
      %p45 = scmp.ne.s32.totalorder %s34, %s37
      %p46 = scmp.eq.s32.totalorder %s17, 1
      %p47 = por %p45, %p46
      %p48 = scmp.ne.s32.totalorder %s37, %s38
      %p49 = scmp.eq.s32.totalorder %s17, 0
      %p50 = por %p48, %p49
      %p51 = scmp.ne.s32.totalorder %s37, %s38
      %p52 = scmp.eq.s32.totalorder %s18, 1
      %p53 = por %p51, %p52
      %p55 = scmp.ne.s32.totalorder %s38, %s54
      %p56 = scmp.eq.s32.totalorder %s18, 0
      %p57 = por %p55, %p56
      %s58 = ssub.s32 %s20, %s27
      %p59 = scmp.eq.s32.totalorder %s58, 0
      %s61 = sadd.s32 %s60, 1
      %s62 = scalar_select %p59, %s60, %s61
      %p65 = pneg %p59
      %p66 = scmp.eq.s32.totalorder %s12, 1
      %p67 = por %p65, %p66
      %p68 = scmp.ne.s32.totalorder %s60, %s63
      %p69 = scmp.eq.s32.totalorder %s12, 0
      %p70 = por %p68, %p69
      %p71 = scmp.ne.s32.totalorder %s60, %s63
      %p72 = scmp.eq.s32.totalorder %s17, 1
      %p73 = por %p71, %p72
      %p74 = scmp.ne.s32.totalorder %s63, %s64
      %p75 = scmp.eq.s32.totalorder %s17, 0
      %p76 = por %p74, %p75
      %p77 = scmp.ne.s32.totalorder %s63, %s64
      %p78 = scmp.eq.s32.totalorder %s18, 1
      %p79 = por %p77, %p78
      %p81 = scmp.ne.s32.totalorder %s64, %s80
      %p82 = scmp.eq.s32.totalorder %s18, 0
      %p83 = por %p81, %p82
      %s84 = ssub.s32 %s20, %s27
      %p85 = scmp.eq.s32.totalorder %s84, 0
      %s87 = sadd.s32 %s86, 1
      %s88 = scalar_select %p85, %s86, %s87
      %p91 = pneg %p85
      %p92 = scmp.eq.s32.totalorder %s12, 1
      %p93 = por %p91, %p92
      %p94 = scmp.ne.s32.totalorder %s86, %s89
      %p95 = scmp.eq.s32.totalorder %s12, 0
      %p96 = por %p94, %p95
      %p97 = scmp.ne.s32.totalorder %s86, %s89
      %p98 = scmp.eq.s32.totalorder %s17, 1
      %p99 = por %p97, %p98
      %p100 = scmp.ne.s32.totalorder %s89, %s90
      %p101 = scmp.eq.s32.totalorder %s17, 0
      %p102 = por %p100, %p101
      %p103 = scmp.ne.s32.totalorder %s89, %s90
      %p104 = scmp.eq.s32.totalorder %s18, 1
      %p105 = por %p103, %p104
      %p107 = scmp.ne.s32.totalorder %s90, %s106
      %p108 = scmp.eq.s32.totalorder %s18, 0
      %p109 = por %p107, %p108
      %s110 = ssub.s32 %s20, %s27
      %p111 = scmp.eq.s32.totalorder %s110, 0
      %s113 = sadd.s32 %s112, 1
      %s114 = scalar_select %p111, %s112, %s113
      %p117 = pneg %p111
      %p118 = scmp.eq.s32.totalorder %s12, 1
      %p119 = por %p117, %p118
      %p120 = scmp.ne.s32.totalorder %s112, %s115
      %p121 = scmp.eq.s32.totalorder %s12, 0
      %p122 = por %p120, %p121
      %p123 = scmp.ne.s32.totalorder %s112, %s115
      %p124 = scmp.eq.s32.totalorder %s17, 1
      %p125 = por %p123, %p124
      %p126 = scmp.ne.s32.totalorder %s115, %s116
      %p127 = scmp.eq.s32.totalorder %s17, 0
      %p128 = por %p126, %p127
      %p129 = scmp.ne.s32.totalorder %s115, %s116
      %p130 = scmp.eq.s32.totalorder %s18, 1
      %p131 = por %p129, %p130
      %p133 = scmp.ne.s32.totalorder %s116, %s132
      %p134 = scmp.eq.s32.totalorder %s18, 0
      %p135 = por %p133, %p134
      %s137 = sadd.s32 %s136, 1
      %p140 = scmp.eq.s32.totalorder %s12, 1
      %p141 = scmp.ne.s32.totalorder %s136, %s138
      %p142 = scmp.eq.s32.totalorder %s12, 0
      %p143 = por %p141, %p142
      %p144 = scmp.ne.s32.totalorder %s136, %s138
      %p145 = scmp.eq.s32.totalorder %s17, 1
      %p146 = por %p144, %p145
      %p147 = scmp.ne.s32.totalorder %s138, %s139
      %p148 = scmp.eq.s32.totalorder %s17, 0
      %p149 = por %p147, %p148
      %p150 = scmp.ne.s32.totalorder %s138, %s139
      %p151 = scmp.eq.s32.totalorder %s18, 1
      %p152 = por %p150, %p151
      %p154 = scmp.ne.s32.totalorder %s139, %s153
      %p155 = scmp.eq.s32.totalorder %s18, 0
      %p156 = por %p154, %p155
      %s157 = ssub.s32 %s19, %s31
      %p158 = scmp.eq.s32.totalorder %s157, 0
      %s160 = sadd.s32 %s159, 1
      %s161 = scalar_select %p158, %s159, %s160
      %p164 = pneg %p158
      %p165 = scmp.eq.s32.totalorder %s12, 1
      %p166 = por %p164, %p165
      %p167 = scmp.ne.s32.totalorder %s159, %s162
      %p168 = scmp.eq.s32.totalorder %s12, 0
      %p169 = por %p167, %p168
      %p170 = scmp.ne.s32.totalorder %s159, %s162
      %p171 = scmp.eq.s32.totalorder %s17, 1
      %p172 = por %p170, %p171
      %p173 = scmp.ne.s32.totalorder %s162, %s163
      %p174 = scmp.eq.s32.totalorder %s17, 0
      %p175 = por %p173, %p174
      %p176 = scmp.ne.s32.totalorder %s162, %s163
      %p177 = scmp.eq.s32.totalorder %s18, 1
      %p178 = por %p176, %p177
      %p180 = scmp.ne.s32.totalorder %s163, %s179
      %p181 = scmp.eq.s32.totalorder %s18, 0
      %p182 = por %p180, %p181
      %p183 = scmp.le.s32.totalorder 1, %s12
      %p184 = scmp.lt.s32.totalorder %s12, 3
      %p185 = pnand %p183, %p184
      %p186 = pneg %p185
      // Predicated region
      $region9: #{mlp_forward.1} parent=5 // pred_check
        _
      $region10: #{mlp_forward.1} parent=5 // pred_check_branch
        %188 = sbr.rel (%p185) target = $region12
      $region11: #{mlp_forward.1} parent=5 // pred_region
        %s189 = ssub.s32 %s12, 1
        // Predicated region
        $region13: #{mlp_forward.1} parent=11 // pred_check
          %p190 = pneg %p50
        $region14: #{mlp_forward.1} parent=11 // pred_check_branch
          %192 = sbr.rel (%p190) target = $region16
        $region15: #{mlp_forward.1} parent=11 // pred_region
          %p193 = scmp.lt.s32.totalorder %s21, 0
          %s194 = scalar_select %p193, %s21, 0
          %s195 = smul.addr %s194, 8
          %s196 = smul.addr %s195, 4
          %s197 = scalar_lea.vmem %s0, %s196
        $region16: #{mlp_forward.1} parent=11 // pred_fallthru
          _
        // Predicated region
        $region17: #{mlp_forward.1} parent=11 // pred_check
          %p198 = pneg %p149
        $region18: #{mlp_forward.1} parent=11 // pred_check_branch
          %200 = sbr.rel (%p198) target = $region20
        $region19: #{mlp_forward.1} parent=11 // pred_region
          _
        $region20: #{mlp_forward.1} parent=11 // pred_fallthru
          _
      $region12: #{mlp_forward.1} parent=5 // pred_fallthru
        _
      %p201 = scmp.lt.s32.totalorder %s12, 2
      // Predicated region
      $region21: #{mlp_forward.1} parent=5 // pred_check
        %p202 = pneg %p201
      $region22: #{mlp_forward.1} parent=5 // pred_check_branch
        %204 = sbr.rel (%p202) target = $region24
      $region23: #{mlp_forward.1} parent=5 // pred_region
        // Predicated region
        $region25: #{mlp_forward.1} parent=23 // pred_check
          %p205 = pneg %p70
        $region26: #{mlp_forward.1} parent=23 // pred_check_branch
          %207 = sbr.rel (%p205) target = $region28
        $region27: #{mlp_forward.1} parent=23 // pred_region
          %s208 = sand.u32 %s60, 1
          %s209 = sand.u32 %s60, 1
          %s210 = smul.addr %s209, 1024
          %s211 = scalar_lea.vmem [#allocation3], %s210
          %s212 = smul.u32 2, %s20
          %s213 = smul.addr %s212, 4
          %s214 = scalar_lea.vmem %s1, %s213
          // Predicated region
          $region29: #{mlp_forward.1} parent=27 // pred_check
            _
          $region30: #{mlp_forward.1} parent=27 // pred_check_branch
            %216 = sbr.rel (0) target = $region32
          $region31: #{mlp_forward.1} parent=27 // pred_region
            // Predicated region
            $region33: #{mlp_forward.1} parent=31 // pred_check
              _
            $region34: #{mlp_forward.1} parent=31 // pred_check_branch
              %218 = sbr.rel (0) target = $region36
            $region35: #{mlp_forward.1} parent=31 // pred_region
              // Predicated region
              $region48: #{mlp_forward.1} parent=35 // pred_check
                _
              $region49: #{mlp_forward.1} parent=35 // pred_check_branch
                %488 = sbr.rel (0) target = $region51
              $region50: #{mlp_forward.1} parent=35 // pred_region
                loop: start=0, step=1, limit=1
                $region52: #{mlp_forward.1} parent=50 // loop_pre_header
                  _
                $region53: #{mlp_forward.1} parent=50 // loop_header
                  %s490 = sphi 0, %s494
                  %p491 = scmp.ge.s32.totalorder %s490, 1
                  %s495 = sphi %s214, %s214
                  %s496 = sphi %s211, %s211
                $region54: #{mlp_forward.1} parent=50 // loop_header_branch
                  %493 = sbr.rel (%p491) target = $region58
                $region55: #{mlp_forward.1} parent=50 // loop_body
                  %v497 = vld [vmem:[%s495] sm:$0xff]
                  %498 = vst [vmem:[%s496] sm:$0xff] %v497
                  %v499 = vld [vmem:[%s495 + $0x10] sm:$0xff]
                  %500 = vst [vmem:[%s496 + $0x8] sm:$0xff] %v499
                  %v501 = vld [vmem:[%s495 + $0x20] sm:$0xff]
                  %502 = vst [vmem:[%s496 + $0x10] sm:$0xff] %v501
                  %v503 = vld [vmem:[%s495 + $0x30] sm:$0xff]
                  %504 = vst [vmem:[%s496 + $0x18] sm:$0xff] %v503
                  %v505 = vld [vmem:[%s495 + $0x40] sm:$0xff]
                  %506 = vst [vmem:[%s496 + $0x20] sm:$0xff] %v505
                  %v507 = vld [vmem:[%s495 + $0x50] sm:$0xff]
                  %508 = vst [vmem:[%s496 + $0x28] sm:$0xff] %v507
                  %v509 = vld [vmem:[%s495 + $0x60] sm:$0xff]
                  %510 = vst [vmem:[%s496 + $0x30] sm:$0xff] %v509
                  %v511 = vld [vmem:[%s495 + $0x70] sm:$0xff]
                  %512 = vst [vmem:[%s496 + $0x38] sm:$0xff] %v511
                  %v513 = vld [vmem:[%s495 + $0x80] sm:$0xff]
                  %514 = vst [vmem:[%s496 + $0x40] sm:$0xff] %v513
                  %v515 = vld [vmem:[%s495 + $0x90] sm:$0xff]
                  %516 = vst [vmem:[%s496 + $0x48] sm:$0xff] %v515
                  %v517 = vld [vmem:[%s495 + $0xa0] sm:$0xff]
                  %518 = vst [vmem:[%s496 + $0x50] sm:$0xff] %v517
                  %v519 = vld [vmem:[%s495 + $0xb0] sm:$0xff]
                  %520 = vst [vmem:[%s496 + $0x58] sm:$0xff] %v519
                  %v521 = vld [vmem:[%s495 + $0xc0] sm:$0xff]
                  %522 = vst [vmem:[%s496 + $0x60] sm:$0xff] %v521
                  %v523 = vld [vmem:[%s495 + $0xd0] sm:$0xff]
                  %524 = vst [vmem:[%s496 + $0x68] sm:$0xff] %v523
                  %v525 = vld [vmem:[%s495 + $0xe0] sm:$0xff]
                  %526 = vst [vmem:[%s496 + $0x70] sm:$0xff] %v525
                  %v527 = vld [vmem:[%s495 + $0xf0] sm:$0xff]
                  %528 = vst [vmem:[%s496 + $0x78] sm:$0xff] %v527
                  %v529 = vld [vmem:[%s495 + $0x100] sm:$0xff]
                  %530 = vst [vmem:[%s496 + $0x80] sm:$0xff] %v529
                  %v531 = vld [vmem:[%s495 + $0x110] sm:$0xff]
                  %532 = vst [vmem:[%s496 + $0x88] sm:$0xff] %v531
                  %v533 = vld [vmem:[%s495 + $0x120] sm:$0xff]
                  %534 = vst [vmem:[%s496 + $0x90] sm:$0xff] %v533
                  %v535 = vld [vmem:[%s495 + $0x130] sm:$0xff]
                  %536 = vst [vmem:[%s496 + $0x98] sm:$0xff] %v535
                  %v537 = vld [vmem:[%s495 + $0x140] sm:$0xff]
                  %538 = vst [vmem:[%s496 + $0xa0] sm:$0xff] %v537
                  %v539 = vld [vmem:[%s495 + $0x150] sm:$0xff]
                  %540 = vst [vmem:[%s496 + $0xa8] sm:$0xff] %v539
                  %v541 = vld [vmem:[%s495 + $0x160] sm:$0xff]
                  %542 = vst [vmem:[%s496 + $0xb0] sm:$0xff] %v541
                  %v543 = vld [vmem:[%s495 + $0x170] sm:$0xff]
                  %544 = vst [vmem:[%s496 + $0xb8] sm:$0xff] %v543
                  %v545 = vld [vmem:[%s495 + $0x180] sm:$0xff]
                  %546 = vst [vmem:[%s496 + $0xc0] sm:$0xff] %v545
                  %v547 = vld [vmem:[%s495 + $0x190] sm:$0xff]
                  %548 = vst [vmem:[%s496 + $0xc8] sm:$0xff] %v547
                  %v549 = vld [vmem:[%s495 + $0x1a0] sm:$0xff]
                  %550 = vst [vmem:[%s496 + $0xd0] sm:$0xff] %v549
                  %v551 = vld [vmem:[%s495 + $0x1b0] sm:$0xff]
                  %552 = vst [vmem:[%s496 + $0xd8] sm:$0xff] %v551
                  %v553 = vld [vmem:[%s495 + $0x1c0] sm:$0xff]
                  %554 = vst [vmem:[%s496 + $0xe0] sm:$0xff] %v553
                  %v555 = vld [vmem:[%s495 + $0x1d0] sm:$0xff]
                  %556 = vst [vmem:[%s496 + $0xe8] sm:$0xff] %v555
                  %v557 = vld [vmem:[%s495 + $0x1e0] sm:$0xff]
                  %558 = vst [vmem:[%s496 + $0xf0] sm:$0xff] %v557
                  %v559 = vld [vmem:[%s495 + $0x1f0] sm:$0xff]
                  %560 = vst [vmem:[%s496 + $0xf8] sm:$0xff] %v559
                  %v561 = vld [vmem:[%s495 + $0x200] sm:$0xff]
                  %562 = vst [vmem:[%s496 + $0x100] sm:$0xff] %v561
                  %v563 = vld [vmem:[%s495 + $0x210] sm:$0xff]
                  %564 = vst [vmem:[%s496 + $0x108] sm:$0xff] %v563
                  %v565 = vld [vmem:[%s495 + $0x220] sm:$0xff]
                  %566 = vst [vmem:[%s496 + $0x110] sm:$0xff] %v565
                  %v567 = vld [vmem:[%s495 + $0x230] sm:$0xff]
                  %568 = vst [vmem:[%s496 + $0x118] sm:$0xff] %v567
                  %v569 = vld [vmem:[%s495 + $0x240] sm:$0xff]
                  %570 = vst [vmem:[%s496 + $0x120] sm:$0xff] %v569
                  %v571 = vld [vmem:[%s495 + $0x250] sm:$0xff]
                  %572 = vst [vmem:[%s496 + $0x128] sm:$0xff] %v571
                  %v573 = vld [vmem:[%s495 + $0x260] sm:$0xff]
                  %574 = vst [vmem:[%s496 + $0x130] sm:$0xff] %v573
                  %v575 = vld [vmem:[%s495 + $0x270] sm:$0xff]
                  %576 = vst [vmem:[%s496 + $0x138] sm:$0xff] %v575
                  %v577 = vld [vmem:[%s495 + $0x280] sm:$0xff]
                  %578 = vst [vmem:[%s496 + $0x140] sm:$0xff] %v577
                  %v579 = vld [vmem:[%s495 + $0x290] sm:$0xff]
                  %580 = vst [vmem:[%s496 + $0x148] sm:$0xff] %v579
                  %v581 = vld [vmem:[%s495 + $0x2a0] sm:$0xff]
                  %582 = vst [vmem:[%s496 + $0x150] sm:$0xff] %v581
                  %v583 = vld [vmem:[%s495 + $0x2b0] sm:$0xff]
                  %584 = vst [vmem:[%s496 + $0x158] sm:$0xff] %v583
                  %v585 = vld [vmem:[%s495 + $0x2c0] sm:$0xff]
                  %586 = vst [vmem:[%s496 + $0x160] sm:$0xff] %v585
                  %v587 = vld [vmem:[%s495 + $0x2d0] sm:$0xff]
                  %588 = vst [vmem:[%s496 + $0x168] sm:$0xff] %v587
                  %v589 = vld [vmem:[%s495 + $0x2e0] sm:$0xff]
                  %590 = vst [vmem:[%s496 + $0x170] sm:$0xff] %v589
                  %v591 = vld [vmem:[%s495 + $0x2f0] sm:$0xff]
                  %592 = vst [vmem:[%s496 + $0x178] sm:$0xff] %v591
                  %v593 = vld [vmem:[%s495 + $0x300] sm:$0xff]
                  %594 = vst [vmem:[%s496 + $0x180] sm:$0xff] %v593
                  %v595 = vld [vmem:[%s495 + $0x310] sm:$0xff]
                  %596 = vst [vmem:[%s496 + $0x188] sm:$0xff] %v595
                  %v597 = vld [vmem:[%s495 + $0x320] sm:$0xff]
                  %598 = vst [vmem:[%s496 + $0x190] sm:$0xff] %v597
                  %v599 = vld [vmem:[%s495 + $0x330] sm:$0xff]
                  %600 = vst [vmem:[%s496 + $0x198] sm:$0xff] %v599
                  %v601 = vld [vmem:[%s495 + $0x340] sm:$0xff]
                  %602 = vst [vmem:[%s496 + $0x1a0] sm:$0xff] %v601
                  %v603 = vld [vmem:[%s495 + $0x350] sm:$0xff]
                  %604 = vst [vmem:[%s496 + $0x1a8] sm:$0xff] %v603
                  %v605 = vld [vmem:[%s495 + $0x360] sm:$0xff]
                  %606 = vst [vmem:[%s496 + $0x1b0] sm:$0xff] %v605
                  %v607 = vld [vmem:[%s495 + $0x370] sm:$0xff]
                  %608 = vst [vmem:[%s496 + $0x1b8] sm:$0xff] %v607
                  %v609 = vld [vmem:[%s495 + $0x380] sm:$0xff]
                  %610 = vst [vmem:[%s496 + $0x1c0] sm:$0xff] %v609
                  %v611 = vld [vmem:[%s495 + $0x390] sm:$0xff]
                  %612 = vst [vmem:[%s496 + $0x1c8] sm:$0xff] %v611
                  %v613 = vld [vmem:[%s495 + $0x3a0] sm:$0xff]
                  %614 = vst [vmem:[%s496 + $0x1d0] sm:$0xff] %v613
                  %v615 = vld [vmem:[%s495 + $0x3b0] sm:$0xff]
                  %616 = vst [vmem:[%s496 + $0x1d8] sm:$0xff] %v615
                  %v617 = vld [vmem:[%s495 + $0x3c0] sm:$0xff]
                  %618 = vst [vmem:[%s496 + $0x1e0] sm:$0xff] %v617
                  %v619 = vld [vmem:[%s495 + $0x3d0] sm:$0xff]
                  %620 = vst [vmem:[%s496 + $0x1e8] sm:$0xff] %v619
                  %v621 = vld [vmem:[%s495 + $0x3e0] sm:$0xff]
                  %622 = vst [vmem:[%s496 + $0x1f0] sm:$0xff] %v621
                  %v623 = vld [vmem:[%s495 + $0x3f0] sm:$0xff]
                  %624 = vst [vmem:[%s496 + $0x1f8] sm:$0xff] %v623
                  %v625 = vld [vmem:[%s495 + $0x400] sm:$0xff]
                  %626 = vst [vmem:[%s496 + $0x200] sm:$0xff] %v625
                  %v627 = vld [vmem:[%s495 + $0x410] sm:$0xff]
                  %628 = vst [vmem:[%s496 + $0x208] sm:$0xff] %v627
                  %v629 = vld [vmem:[%s495 + $0x420] sm:$0xff]
                  %630 = vst [vmem:[%s496 + $0x210] sm:$0xff] %v629
                  %v631 = vld [vmem:[%s495 + $0x430] sm:$0xff]
                  %632 = vst [vmem:[%s496 + $0x218] sm:$0xff] %v631
                  %v633 = vld [vmem:[%s495 + $0x440] sm:$0xff]
                  %634 = vst [vmem:[%s496 + $0x220] sm:$0xff] %v633
                  %v635 = vld [vmem:[%s495 + $0x450] sm:$0xff]
                  %636 = vst [vmem:[%s496 + $0x228] sm:$0xff] %v635
                  %v637 = vld [vmem:[%s495 + $0x460] sm:$0xff]
                  %638 = vst [vmem:[%s496 + $0x230] sm:$0xff] %v637
                  %v639 = vld [vmem:[%s495 + $0x470] sm:$0xff]
                  %640 = vst [vmem:[%s496 + $0x238] sm:$0xff] %v639
                  %v641 = vld [vmem:[%s495 + $0x480] sm:$0xff]
                  %642 = vst [vmem:[%s496 + $0x240] sm:$0xff] %v641
                  %v643 = vld [vmem:[%s495 + $0x490] sm:$0xff]
                  %644 = vst [vmem:[%s496 + $0x248] sm:$0xff] %v643
                  %v645 = vld [vmem:[%s495 + $0x4a0] sm:$0xff]
                  %646 = vst [vmem:[%s496 + $0x250] sm:$0xff] %v645
                  %v647 = vld [vmem:[%s495 + $0x4b0] sm:$0xff]
                  %648 = vst [vmem:[%s496 + $0x258] sm:$0xff] %v647
                  %v649 = vld [vmem:[%s495 + $0x4c0] sm:$0xff]
                  %650 = vst [vmem:[%s496 + $0x260] sm:$0xff] %v649
                  %v651 = vld [vmem:[%s495 + $0x4d0] sm:$0xff]
                  %652 = vst [vmem:[%s496 + $0x268] sm:$0xff] %v651
                  %v653 = vld [vmem:[%s495 + $0x4e0] sm:$0xff]
                  %654 = vst [vmem:[%s496 + $0x270] sm:$0xff] %v653
                  %v655 = vld [vmem:[%s495 + $0x4f0] sm:$0xff]
                  %656 = vst [vmem:[%s496 + $0x278] sm:$0xff] %v655
                  %v657 = vld [vmem:[%s495 + $0x500] sm:$0xff]
                  %658 = vst [vmem:[%s496 + $0x280] sm:$0xff] %v657
                  %v659 = vld [vmem:[%s495 + $0x510] sm:$0xff]
                  %660 = vst [vmem:[%s496 + $0x288] sm:$0xff] %v659
                  %v661 = vld [vmem:[%s495 + $0x520] sm:$0xff]
                  %662 = vst [vmem:[%s496 + $0x290] sm:$0xff] %v661
                  %v663 = vld [vmem:[%s495 + $0x530] sm:$0xff]
                  %664 = vst [vmem:[%s496 + $0x298] sm:$0xff] %v663
                  %v665 = vld [vmem:[%s495 + $0x540] sm:$0xff]
                  %666 = vst [vmem:[%s496 + $0x2a0] sm:$0xff] %v665
                  %v667 = vld [vmem:[%s495 + $0x550] sm:$0xff]
                  %668 = vst [vmem:[%s496 + $0x2a8] sm:$0xff] %v667
                  %v669 = vld [vmem:[%s495 + $0x560] sm:$0xff]
                  %670 = vst [vmem:[%s496 + $0x2b0] sm:$0xff] %v669
                  %v671 = vld [vmem:[%s495 + $0x570] sm:$0xff]
                  %672 = vst [vmem:[%s496 + $0x2b8] sm:$0xff] %v671
                  %v673 = vld [vmem:[%s495 + $0x580] sm:$0xff]
                  %674 = vst [vmem:[%s496 + $0x2c0] sm:$0xff] %v673
                  %v675 = vld [vmem:[%s495 + $0x590] sm:$0xff]
                  %676 = vst [vmem:[%s496 + $0x2c8] sm:$0xff] %v675
                  %v677 = vld [vmem:[%s495 + $0x5a0] sm:$0xff]
                  %678 = vst [vmem:[%s496 + $0x2d0] sm:$0xff] %v677
                  %v679 = vld [vmem:[%s495 + $0x5b0] sm:$0xff]
                  %680 = vst [vmem:[%s496 + $0x2d8] sm:$0xff] %v679
                  %v681 = vld [vmem:[%s495 + $0x5c0] sm:$0xff]
                  %682 = vst [vmem:[%s496 + $0x2e0] sm:$0xff] %v681
                  %v683 = vld [vmem:[%s495 + $0x5d0] sm:$0xff]
                  %684 = vst [vmem:[%s496 + $0x2e8] sm:$0xff] %v683
                  %v685 = vld [vmem:[%s495 + $0x5e0] sm:$0xff]
                  %686 = vst [vmem:[%s496 + $0x2f0] sm:$0xff] %v685
                  %v687 = vld [vmem:[%s495 + $0x5f0] sm:$0xff]
                  %688 = vst [vmem:[%s496 + $0x2f8] sm:$0xff] %v687
                  %v689 = vld [vmem:[%s495 + $0x600] sm:$0xff]
                  %690 = vst [vmem:[%s496 + $0x300] sm:$0xff] %v689
                  %v691 = vld [vmem:[%s495 + $0x610] sm:$0xff]
                  %692 = vst [vmem:[%s496 + $0x308] sm:$0xff] %v691
                  %v693 = vld [vmem:[%s495 + $0x620] sm:$0xff]
                  %694 = vst [vmem:[%s496 + $0x310] sm:$0xff] %v693
                  %v695 = vld [vmem:[%s495 + $0x630] sm:$0xff]
                  %696 = vst [vmem:[%s496 + $0x318] sm:$0xff] %v695
                  %v697 = vld [vmem:[%s495 + $0x640] sm:$0xff]
                  %698 = vst [vmem:[%s496 + $0x320] sm:$0xff] %v697
                  %v699 = vld [vmem:[%s495 + $0x650] sm:$0xff]
                  %700 = vst [vmem:[%s496 + $0x328] sm:$0xff] %v699
                  %v701 = vld [vmem:[%s495 + $0x660] sm:$0xff]
                  %702 = vst [vmem:[%s496 + $0x330] sm:$0xff] %v701
                  %v703 = vld [vmem:[%s495 + $0x670] sm:$0xff]
                  %704 = vst [vmem:[%s496 + $0x338] sm:$0xff] %v703
                  %v705 = vld [vmem:[%s495 + $0x680] sm:$0xff]
                  %706 = vst [vmem:[%s496 + $0x340] sm:$0xff] %v705
                  %v707 = vld [vmem:[%s495 + $0x690] sm:$0xff]
                  %708 = vst [vmem:[%s496 + $0x348] sm:$0xff] %v707
                  %v709 = vld [vmem:[%s495 + $0x6a0] sm:$0xff]
                  %710 = vst [vmem:[%s496 + $0x350] sm:$0xff] %v709
                  %v711 = vld [vmem:[%s495 + $0x6b0] sm:$0xff]
                  %712 = vst [vmem:[%s496 + $0x358] sm:$0xff] %v711
                  %v713 = vld [vmem:[%s495 + $0x6c0] sm:$0xff]
                  %714 = vst [vmem:[%s496 + $0x360] sm:$0xff] %v713
                  %v715 = vld [vmem:[%s495 + $0x6d0] sm:$0xff]
                  %716 = vst [vmem:[%s496 + $0x368] sm:$0xff] %v715
                  %v717 = vld [vmem:[%s495 + $0x6e0] sm:$0xff]
                  %718 = vst [vmem:[%s496 + $0x370] sm:$0xff] %v717
                  %v719 = vld [vmem:[%s495 + $0x6f0] sm:$0xff]
                  %720 = vst [vmem:[%s496 + $0x378] sm:$0xff] %v719
                  %v721 = vld [vmem:[%s495 + $0x700] sm:$0xff]
                  %722 = vst [vmem:[%s496 + $0x380] sm:$0xff] %v721
                  %v723 = vld [vmem:[%s495 + $0x710] sm:$0xff]
                  %724 = vst [vmem:[%s496 + $0x388] sm:$0xff] %v723
                  %v725 = vld [vmem:[%s495 + $0x720] sm:$0xff]
                  %726 = vst [vmem:[%s496 + $0x390] sm:$0xff] %v725
                  %v727 = vld [vmem:[%s495 + $0x730] sm:$0xff]
                  %728 = vst [vmem:[%s496 + $0x398] sm:$0xff] %v727
                  %v729 = vld [vmem:[%s495 + $0x740] sm:$0xff]
                  %730 = vst [vmem:[%s496 + $0x3a0] sm:$0xff] %v729
                  %v731 = vld [vmem:[%s495 + $0x750] sm:$0xff]
                  %732 = vst [vmem:[%s496 + $0x3a8] sm:$0xff] %v731
                  %v733 = vld [vmem:[%s495 + $0x760] sm:$0xff]
                  %734 = vst [vmem:[%s496 + $0x3b0] sm:$0xff] %v733
                  %v735 = vld [vmem:[%s495 + $0x770] sm:$0xff]
                  %736 = vst [vmem:[%s496 + $0x3b8] sm:$0xff] %v735
                  %v737 = vld [vmem:[%s495 + $0x780] sm:$0xff]
                  %738 = vst [vmem:[%s496 + $0x3c0] sm:$0xff] %v737
                  %v739 = vld [vmem:[%s495 + $0x790] sm:$0xff]
                  %740 = vst [vmem:[%s496 + $0x3c8] sm:$0xff] %v739
                  %v741 = vld [vmem:[%s495 + $0x7a0] sm:$0xff]
                  %742 = vst [vmem:[%s496 + $0x3d0] sm:$0xff] %v741
                  %v743 = vld [vmem:[%s495 + $0x7b0] sm:$0xff]
                  %744 = vst [vmem:[%s496 + $0x3d8] sm:$0xff] %v743
                  %v745 = vld [vmem:[%s495 + $0x7c0] sm:$0xff]
                  %746 = vst [vmem:[%s496 + $0x3e0] sm:$0xff] %v745
                  %v747 = vld [vmem:[%s495 + $0x7d0] sm:$0xff]
                  %748 = vst [vmem:[%s496 + $0x3e8] sm:$0xff] %v747
                  %v749 = vld [vmem:[%s495 + $0x7e0] sm:$0xff]
                  %750 = vst [vmem:[%s496 + $0x3f0] sm:$0xff] %v749
                  %v751 = vld [vmem:[%s495 + $0x7f0] sm:$0xff]
                  %752 = vst [vmem:[%s496 + $0x3f8] sm:$0xff] %v751
                $region56: #{mlp_forward.1} parent=50 // loop_footer
                  %s494 = sadd.s32 1, %s490
                $region57: #{mlp_forward.1} parent=50 // loop_footer_branch
                  %489 = sbr.rel target = $region53
                $region58: #{mlp_forward.1} parent=50 // loop_exit
                  _
              $region51: #{mlp_forward.1} parent=35 // pred_fallthru
                _
              // Predicated region
              $region59: #{mlp_forward.1} parent=35 // pred_check
                _
              $region60: #{mlp_forward.1} parent=35 // pred_check_branch
                %754 = sbr.rel target = $region62
              $region61: #{mlp_forward.1} parent=35 // pred_region
                _
              $region62: #{mlp_forward.1} parent=35 // pred_fallthru
                _
            $region36: #{mlp_forward.1} parent=31 // pred_fallthru
              _
            // Predicated region
            $region37: #{mlp_forward.1} parent=31 // pred_check
              _
            $region38: #{mlp_forward.1} parent=31 // pred_check_branch
              %220 = sbr.rel target = $region40
            $region39: #{mlp_forward.1} parent=31 // pred_region
              %s222 = ssub.s32 256, 1
              loop: start=0, step=1, limit=1
              $region41: #{mlp_forward.1} parent=39 // loop_pre_header
                _
              $region42: #{mlp_forward.1} parent=39 // loop_header
                %s224 = sphi 0, %s228
                %p225 = scmp.ge.s32.totalorder %s224, 1
                %s229 = sphi %s214, %s214
                %s230 = sphi %s211, %s211
              $region43: #{mlp_forward.1} parent=39 // loop_header_branch
                %227 = sbr.rel (%p225) target = $region47
              $region44: #{mlp_forward.1} parent=39 // loop_body
                %v231 = vld [vmem:[%s229] sm:%s222]
                %232 = vst [vmem:[%s230] sm:%s222] %v231
                %v233 = vld [vmem:[%s229 + $0x10] sm:%s222]
                %234 = vst [vmem:[%s230 + $0x8] sm:%s222] %v233
                %v235 = vld [vmem:[%s229 + $0x20] sm:%s222]
                %236 = vst [vmem:[%s230 + $0x10] sm:%s222] %v235
                %v237 = vld [vmem:[%s229 + $0x30] sm:%s222]
                %238 = vst [vmem:[%s230 + $0x18] sm:%s222] %v237
                %v239 = vld [vmem:[%s229 + $0x40] sm:%s222]
                %240 = vst [vmem:[%s230 + $0x20] sm:%s222] %v239
                %v241 = vld [vmem:[%s229 + $0x50] sm:%s222]
                %242 = vst [vmem:[%s230 + $0x28] sm:%s222] %v241
                %v243 = vld [vmem:[%s229 + $0x60] sm:%s222]
                %244 = vst [vmem:[%s230 + $0x30] sm:%s222] %v243
                %v245 = vld [vmem:[%s229 + $0x70] sm:%s222]
                %246 = vst [vmem:[%s230 + $0x38] sm:%s222] %v245
                %v247 = vld [vmem:[%s229 + $0x80] sm:%s222]
                %248 = vst [vmem:[%s230 + $0x40] sm:%s222] %v247
                %v249 = vld [vmem:[%s229 + $0x90] sm:%s222]
                %250 = vst [vmem:[%s230 + $0x48] sm:%s222] %v249
                %v251 = vld [vmem:[%s229 + $0xa0] sm:%s222]
                %252 = vst [vmem:[%s230 + $0x50] sm:%s222] %v251
                %v253 = vld [vmem:[%s229 + $0xb0] sm:%s222]
                %254 = vst [vmem:[%s230 + $0x58] sm:%s222] %v253
                %v255 = vld [vmem:[%s229 + $0xc0] sm:%s222]
                %256 = vst [vmem:[%s230 + $0x60] sm:%s222] %v255
                %v257 = vld [vmem:[%s229 + $0xd0] sm:%s222]
                %258 = vst [vmem:[%s230 + $0x68] sm:%s222] %v257
                %v259 = vld [vmem:[%s229 + $0xe0] sm:%s222]
                %260 = vst [vmem:[%s230 + $0x70] sm:%s222] %v259
                %v261 = vld [vmem:[%s229 + $0xf0] sm:%s222]
                %262 = vst [vmem:[%s230 + $0x78] sm:%s222] %v261
                %v263 = vld [vmem:[%s229 + $0x100] sm:%s222]
                %264 = vst [vmem:[%s230 + $0x80] sm:%s222] %v263
                %v265 = vld [vmem:[%s229 + $0x110] sm:%s222]
                %266 = vst [vmem:[%s230 + $0x88] sm:%s222] %v265
                %v267 = vld [vmem:[%s229 + $0x120] sm:%s222]
                %268 = vst [vmem:[%s230 + $0x90] sm:%s222] %v267
                %v269 = vld [vmem:[%s229 + $0x130] sm:%s222]
                %270 = vst [vmem:[%s230 + $0x98] sm:%s222] %v269
                %v271 = vld [vmem:[%s229 + $0x140] sm:%s222]
                %272 = vst [vmem:[%s230 + $0xa0] sm:%s222] %v271
                %v273 = vld [vmem:[%s229 + $0x150] sm:%s222]
                %274 = vst [vmem:[%s230 + $0xa8] sm:%s222] %v273
                %v275 = vld [vmem:[%s229 + $0x160] sm:%s222]
                %276 = vst [vmem:[%s230 + $0xb0] sm:%s222] %v275
                %v277 = vld [vmem:[%s229 + $0x170] sm:%s222]
                %278 = vst [vmem:[%s230 + $0xb8] sm:%s222] %v277
                %v279 = vld [vmem:[%s229 + $0x180] sm:%s222]
                %280 = vst [vmem:[%s230 + $0xc0] sm:%s222] %v279
                %v281 = vld [vmem:[%s229 + $0x190] sm:%s222]
                %282 = vst [vmem:[%s230 + $0xc8] sm:%s222] %v281
                %v283 = vld [vmem:[%s229 + $0x1a0] sm:%s222]
                %284 = vst [vmem:[%s230 + $0xd0] sm:%s222] %v283
                %v285 = vld [vmem:[%s229 + $0x1b0] sm:%s222]
                %286 = vst [vmem:[%s230 + $0xd8] sm:%s222] %v285
                %v287 = vld [vmem:[%s229 + $0x1c0] sm:%s222]
                %288 = vst [vmem:[%s230 + $0xe0] sm:%s222] %v287
                %v289 = vld [vmem:[%s229 + $0x1d0] sm:%s222]
                %290 = vst [vmem:[%s230 + $0xe8] sm:%s222] %v289
                %v291 = vld [vmem:[%s229 + $0x1e0] sm:%s222]
                %292 = vst [vmem:[%s230 + $0xf0] sm:%s222] %v291
                %v293 = vld [vmem:[%s229 + $0x1f0] sm:%s222]
                %294 = vst [vmem:[%s230 + $0xf8] sm:%s222] %v293
                %v295 = vld [vmem:[%s229 + $0x200] sm:%s222]
                %296 = vst [vmem:[%s230 + $0x100] sm:%s222] %v295
                %v297 = vld [vmem:[%s229 + $0x210] sm:%s222]
                %298 = vst [vmem:[%s230 + $0x108] sm:%s222] %v297
                %v299 = vld [vmem:[%s229 + $0x220] sm:%s222]
                %300 = vst [vmem:[%s230 + $0x110] sm:%s222] %v299
                %v301 = vld [vmem:[%s229 + $0x230] sm:%s222]
                %302 = vst [vmem:[%s230 + $0x118] sm:%s222] %v301
                %v303 = vld [vmem:[%s229 + $0x240] sm:%s222]
                %304 = vst [vmem:[%s230 + $0x120] sm:%s222] %v303
                %v305 = vld [vmem:[%s229 + $0x250] sm:%s222]
                %306 = vst [vmem:[%s230 + $0x128] sm:%s222] %v305
                %v307 = vld [vmem:[%s229 + $0x260] sm:%s222]
                %308 = vst [vmem:[%s230 + $0x130] sm:%s222] %v307
                %v309 = vld [vmem:[%s229 + $0x270] sm:%s222]
                %310 = vst [vmem:[%s230 + $0x138] sm:%s222] %v309
                %v311 = vld [vmem:[%s229 + $0x280] sm:%s222]
                %312 = vst [vmem:[%s230 + $0x140] sm:%s222] %v311
                %v313 = vld [vmem:[%s229 + $0x290] sm:%s222]
                %314 = vst [vmem:[%s230 + $0x148] sm:%s222] %v313
                %v315 = vld [vmem:[%s229 + $0x2a0] sm:%s222]
                %316 = vst [vmem:[%s230 + $0x150] sm:%s222] %v315
                %v317 = vld [vmem:[%s229 + $0x2b0] sm:%s222]
                %318 = vst [vmem:[%s230 + $0x158] sm:%s222] %v317
                %v319 = vld [vmem:[%s229 + $0x2c0] sm:%s222]
                %320 = vst [vmem:[%s230 + $0x160] sm:%s222] %v319
                %v321 = vld [vmem:[%s229 + $0x2d0] sm:%s222]
                %322 = vst [vmem:[%s230 + $0x168] sm:%s222] %v321
                %v323 = vld [vmem:[%s229 + $0x2e0] sm:%s222]
                %324 = vst [vmem:[%s230 + $0x170] sm:%s222] %v323
                %v325 = vld [vmem:[%s229 + $0x2f0] sm:%s222]
                %326 = vst [vmem:[%s230 + $0x178] sm:%s222] %v325
                %v327 = vld [vmem:[%s229 + $0x300] sm:%s222]
                %328 = vst [vmem:[%s230 + $0x180] sm:%s222] %v327
                %v329 = vld [vmem:[%s229 + $0x310] sm:%s222]
                %330 = vst [vmem:[%s230 + $0x188] sm:%s222] %v329
                %v331 = vld [vmem:[%s229 + $0x320] sm:%s222]
                %332 = vst [vmem:[%s230 + $0x190] sm:%s222] %v331
                %v333 = vld [vmem:[%s229 + $0x330] sm:%s222]
                %334 = vst [vmem:[%s230 + $0x198] sm:%s222] %v333
                %v335 = vld [vmem:[%s229 + $0x340] sm:%s222]
                %336 = vst [vmem:[%s230 + $0x1a0] sm:%s222] %v335
                %v337 = vld [vmem:[%s229 + $0x350] sm:%s222]
                %338 = vst [vmem:[%s230 + $0x1a8] sm:%s222] %v337
                %v339 = vld [vmem:[%s229 + $0x360] sm:%s222]
                %340 = vst [vmem:[%s230 + $0x1b0] sm:%s222] %v339
                %v341 = vld [vmem:[%s229 + $0x370] sm:%s222]
                %342 = vst [vmem:[%s230 + $0x1b8] sm:%s222] %v341
                %v343 = vld [vmem:[%s229 + $0x380] sm:%s222]
                %344 = vst [vmem:[%s230 + $0x1c0] sm:%s222] %v343
                %v345 = vld [vmem:[%s229 + $0x390] sm:%s222]
                %346 = vst [vmem:[%s230 + $0x1c8] sm:%s222] %v345
                %v347 = vld [vmem:[%s229 + $0x3a0] sm:%s222]
                %348 = vst [vmem:[%s230 + $0x1d0] sm:%s222] %v347
                %v349 = vld [vmem:[%s229 + $0x3b0] sm:%s222]
                %350 = vst [vmem:[%s230 + $0x1d8] sm:%s222] %v349
                %v351 = vld [vmem:[%s229 + $0x3c0] sm:%s222]
                %352 = vst [vmem:[%s230 + $0x1e0] sm:%s222] %v351
                %v353 = vld [vmem:[%s229 + $0x3d0] sm:%s222]
                %354 = vst [vmem:[%s230 + $0x1e8] sm:%s222] %v353
                %v355 = vld [vmem:[%s229 + $0x3e0] sm:%s222]
                %356 = vst [vmem:[%s230 + $0x1f0] sm:%s222] %v355
                %v357 = vld [vmem:[%s229 + $0x3f0] sm:%s222]
                %358 = vst [vmem:[%s230 + $0x1f8] sm:%s222] %v357
                %v359 = vld [vmem:[%s229 + $0x400] sm:%s222]
                %360 = vst [vmem:[%s230 + $0x200] sm:%s222] %v359
                %v361 = vld [vmem:[%s229 + $0x410] sm:%s222]
                %362 = vst [vmem:[%s230 + $0x208] sm:%s222] %v361
                %v363 = vld [vmem:[%s229 + $0x420] sm:%s222]
                %364 = vst [vmem:[%s230 + $0x210] sm:%s222] %v363
                %v365 = vld [vmem:[%s229 + $0x430] sm:%s222]
                %366 = vst [vmem:[%s230 + $0x218] sm:%s222] %v365
                %v367 = vld [vmem:[%s229 + $0x440] sm:%s222]
                %368 = vst [vmem:[%s230 + $0x220] sm:%s222] %v367
                %v369 = vld [vmem:[%s229 + $0x450] sm:%s222]
                %370 = vst [vmem:[%s230 + $0x228] sm:%s222] %v369
                %v371 = vld [vmem:[%s229 + $0x460] sm:%s222]
                %372 = vst [vmem:[%s230 + $0x230] sm:%s222] %v371
                %v373 = vld [vmem:[%s229 + $0x470] sm:%s222]
                %374 = vst [vmem:[%s230 + $0x238] sm:%s222] %v373
                %v375 = vld [vmem:[%s229 + $0x480] sm:%s222]
                %376 = vst [vmem:[%s230 + $0x240] sm:%s222] %v375
                %v377 = vld [vmem:[%s229 + $0x490] sm:%s222]
                %378 = vst [vmem:[%s230 + $0x248] sm:%s222] %v377
                %v379 = vld [vmem:[%s229 + $0x4a0] sm:%s222]
                %380 = vst [vmem:[%s230 + $0x250] sm:%s222] %v379
                %v381 = vld [vmem:[%s229 + $0x4b0] sm:%s222]
                %382 = vst [vmem:[%s230 + $0x258] sm:%s222] %v381
                %v383 = vld [vmem:[%s229 + $0x4c0] sm:%s222]
                %384 = vst [vmem:[%s230 + $0x260] sm:%s222] %v383
                %v385 = vld [vmem:[%s229 + $0x4d0] sm:%s222]
                %386 = vst [vmem:[%s230 + $0x268] sm:%s222] %v385
                %v387 = vld [vmem:[%s229 + $0x4e0] sm:%s222]
                %388 = vst [vmem:[%s230 + $0x270] sm:%s222] %v387
                %v389 = vld [vmem:[%s229 + $0x4f0] sm:%s222]
                %390 = vst [vmem:[%s230 + $0x278] sm:%s222] %v389
                %v391 = vld [vmem:[%s229 + $0x500] sm:%s222]
                %392 = vst [vmem:[%s230 + $0x280] sm:%s222] %v391
                %v393 = vld [vmem:[%s229 + $0x510] sm:%s222]
                %394 = vst [vmem:[%s230 + $0x288] sm:%s222] %v393
                %v395 = vld [vmem:[%s229 + $0x520] sm:%s222]
                %396 = vst [vmem:[%s230 + $0x290] sm:%s222] %v395
                %v397 = vld [vmem:[%s229 + $0x530] sm:%s222]
                %398 = vst [vmem:[%s230 + $0x298] sm:%s222] %v397
                %v399 = vld [vmem:[%s229 + $0x540] sm:%s222]
                %400 = vst [vmem:[%s230 + $0x2a0] sm:%s222] %v399
                %v401 = vld [vmem:[%s229 + $0x550] sm:%s222]
                %402 = vst [vmem:[%s230 + $0x2a8] sm:%s222] %v401
                %v403 = vld [vmem:[%s229 + $0x560] sm:%s222]
                %404 = vst [vmem:[%s230 + $0x2b0] sm:%s222] %v403
                %v405 = vld [vmem:[%s229 + $0x570] sm:%s222]
                %406 = vst [vmem:[%s230 + $0x2b8] sm:%s222] %v405
                %v407 = vld [vmem:[%s229 + $0x580] sm:%s222]
                %408 = vst [vmem:[%s230 + $0x2c0] sm:%s222] %v407
                %v409 = vld [vmem:[%s229 + $0x590] sm:%s222]
                %410 = vst [vmem:[%s230 + $0x2c8] sm:%s222] %v409
                %v411 = vld [vmem:[%s229 + $0x5a0] sm:%s222]
                %412 = vst [vmem:[%s230 + $0x2d0] sm:%s222] %v411
                %v413 = vld [vmem:[%s229 + $0x5b0] sm:%s222]
                %414 = vst [vmem:[%s230 + $0x2d8] sm:%s222] %v413
                %v415 = vld [vmem:[%s229 + $0x5c0] sm:%s222]
                %416 = vst [vmem:[%s230 + $0x2e0] sm:%s222] %v415
                %v417 = vld [vmem:[%s229 + $0x5d0] sm:%s222]
                %418 = vst [vmem:[%s230 + $0x2e8] sm:%s222] %v417
                %v419 = vld [vmem:[%s229 + $0x5e0] sm:%s222]
                %420 = vst [vmem:[%s230 + $0x2f0] sm:%s222] %v419
                %v421 = vld [vmem:[%s229 + $0x5f0] sm:%s222]
                %422 = vst [vmem:[%s230 + $0x2f8] sm:%s222] %v421
                %v423 = vld [vmem:[%s229 + $0x600] sm:%s222]
                %424 = vst [vmem:[%s230 + $0x300] sm:%s222] %v423
                %v425 = vld [vmem:[%s229 + $0x610] sm:%s222]
                %426 = vst [vmem:[%s230 + $0x308] sm:%s222] %v425
                %v427 = vld [vmem:[%s229 + $0x620] sm:%s222]
                %428 = vst [vmem:[%s230 + $0x310] sm:%s222] %v427
                %v429 = vld [vmem:[%s229 + $0x630] sm:%s222]
                %430 = vst [vmem:[%s230 + $0x318] sm:%s222] %v429
                %v431 = vld [vmem:[%s229 + $0x640] sm:%s222]
                %432 = vst [vmem:[%s230 + $0x320] sm:%s222] %v431
                %v433 = vld [vmem:[%s229 + $0x650] sm:%s222]
                %434 = vst [vmem:[%s230 + $0x328] sm:%s222] %v433
                %v435 = vld [vmem:[%s229 + $0x660] sm:%s222]
                %436 = vst [vmem:[%s230 + $0x330] sm:%s222] %v435
                %v437 = vld [vmem:[%s229 + $0x670] sm:%s222]
                %438 = vst [vmem:[%s230 + $0x338] sm:%s222] %v437
                %v439 = vld [vmem:[%s229 + $0x680] sm:%s222]
                %440 = vst [vmem:[%s230 + $0x340] sm:%s222] %v439
                %v441 = vld [vmem:[%s229 + $0x690] sm:%s222]
                %442 = vst [vmem:[%s230 + $0x348] sm:%s222] %v441
                %v443 = vld [vmem:[%s229 + $0x6a0] sm:%s222]
                %444 = vst [vmem:[%s230 + $0x350] sm:%s222] %v443
                %v445 = vld [vmem:[%s229 + $0x6b0] sm:%s222]
                %446 = vst [vmem:[%s230 + $0x358] sm:%s222] %v445
                %v447 = vld [vmem:[%s229 + $0x6c0] sm:%s222]
                %448 = vst [vmem:[%s230 + $0x360] sm:%s222] %v447
                %v449 = vld [vmem:[%s229 + $0x6d0] sm:%s222]
                %450 = vst [vmem:[%s230 + $0x368] sm:%s222] %v449
                %v451 = vld [vmem:[%s229 + $0x6e0] sm:%s222]
                %452 = vst [vmem:[%s230 + $0x370] sm:%s222] %v451
                %v453 = vld [vmem:[%s229 + $0x6f0] sm:%s222]
                %454 = vst [vmem:[%s230 + $0x378] sm:%s222] %v453
                %v455 = vld [vmem:[%s229 + $0x700] sm:%s222]
                %456 = vst [vmem:[%s230 + $0x380] sm:%s222] %v455
                %v457 = vld [vmem:[%s229 + $0x710] sm:%s222]
                %458 = vst [vmem:[%s230 + $0x388] sm:%s222] %v457
                %v459 = vld [vmem:[%s229 + $0x720] sm:%s222]
                %460 = vst [vmem:[%s230 + $0x390] sm:%s222] %v459
                %v461 = vld [vmem:[%s229 + $0x730] sm:%s222]
                %462 = vst [vmem:[%s230 + $0x398] sm:%s222] %v461
                %v463 = vld [vmem:[%s229 + $0x740] sm:%s222]
                %464 = vst [vmem:[%s230 + $0x3a0] sm:%s222] %v463
                %v465 = vld [vmem:[%s229 + $0x750] sm:%s222]
                %466 = vst [vmem:[%s230 + $0x3a8] sm:%s222] %v465
                %v467 = vld [vmem:[%s229 + $0x760] sm:%s222]
                %468 = vst [vmem:[%s230 + $0x3b0] sm:%s222] %v467
                %v469 = vld [vmem:[%s229 + $0x770] sm:%s222]
                %470 = vst [vmem:[%s230 + $0x3b8] sm:%s222] %v469
                %v471 = vld [vmem:[%s229 + $0x780] sm:%s222]
                %472 = vst [vmem:[%s230 + $0x3c0] sm:%s222] %v471
                %v473 = vld [vmem:[%s229 + $0x790] sm:%s222]
                %474 = vst [vmem:[%s230 + $0x3c8] sm:%s222] %v473
                %v475 = vld [vmem:[%s229 + $0x7a0] sm:%s222]
                %476 = vst [vmem:[%s230 + $0x3d0] sm:%s222] %v475
                %v477 = vld [vmem:[%s229 + $0x7b0] sm:%s222]
                %478 = vst [vmem:[%s230 + $0x3d8] sm:%s222] %v477
                %v479 = vld [vmem:[%s229 + $0x7c0] sm:%s222]
                %480 = vst [vmem:[%s230 + $0x3e0] sm:%s222] %v479
                %v481 = vld [vmem:[%s229 + $0x7d0] sm:%s222]
                %482 = vst [vmem:[%s230 + $0x3e8] sm:%s222] %v481
                %v483 = vld [vmem:[%s229 + $0x7e0] sm:%s222]
                %484 = vst [vmem:[%s230 + $0x3f0] sm:%s222] %v483
                %v485 = vld [vmem:[%s229 + $0x7f0] sm:%s222]
                %486 = vst [vmem:[%s230 + $0x3f8] sm:%s222] %v485
              $region45: #{mlp_forward.1} parent=39 // loop_footer
                %s228 = sadd.s32 1, %s224
              $region46: #{mlp_forward.1} parent=39 // loop_footer_branch
                %223 = sbr.rel target = $region42
              $region47: #{mlp_forward.1} parent=39 // loop_exit
                _
            $region40: #{mlp_forward.1} parent=31 // pred_fallthru
              _
          $region32: #{mlp_forward.1} parent=27 // pred_fallthru
            _
          %755 = vnop
        $region28: #{mlp_forward.1} parent=23 // pred_fallthru
          _
        // Predicated region
        $region63: #{mlp_forward.1} parent=23 // pred_check
          %p756 = pneg %p96
        $region64: #{mlp_forward.1} parent=23 // pred_check_branch
          %758 = sbr.rel (%p756) target = $region66
        $region65: #{mlp_forward.1} parent=23 // pred_region
          %s759 = smul.u32 2, %s20
          %p760 = scmp.lt.s32.totalorder %s759, 3
          %s761 = scalar_select %p760, %s759, 3
          %s762 = scalar_lea.vmem %s2, %s761
          %s763 = smul.u32 2, %s20
        $region66: #{mlp_forward.1} parent=23 // pred_fallthru
          _
        // Predicated region
        $region67: #{mlp_forward.1} parent=23 // pred_check
          %p764 = pneg %p122
        $region68: #{mlp_forward.1} parent=23 // pred_check_branch
          %766 = sbr.rel (%p764) target = $region70
        $region69: #{mlp_forward.1} parent=23 // pred_region
          %s767 = smul.u32 32, %s20
          %p768 = scmp.lt.s32.totalorder %s767, 63
          %s769 = scalar_select %p768, %s767, 63
          %s770 = smul.addr %s769, 4
          %s771 = scalar_lea.vmem %s3, %s770
          %s772 = smul.u32 32, %s20
        $region70: #{mlp_forward.1} parent=23 // pred_fallthru
          _
      $region24: #{mlp_forward.1} parent=5 // pred_fallthru
        _
      %p773 = scmp.le.s32.totalorder 1, %s12
      %p774 = scmp.lt.s32.totalorder %s12, 3
      %p775 = pnand %p773, %p774
      %p776 = pneg %p775
      // Predicated region
      $region71: #{mlp_forward.1} parent=5 // pred_check
        _
      $region72: #{mlp_forward.1} parent=5 // pred_check_branch
        %778 = sbr.rel (%p775) target = $region74
      $region73: #{mlp_forward.1} parent=5 // pred_region
        %s779 = ssub.s32 %s12, 1
        %s780 = sand.u32 %s63, 1
        %s781 = sand.u32 %s63, 1
        %s782 = smul.addr %s781, 1024
        %s783 = scalar_lea.vmem [#allocation3], %s782
        // Predicated region
        $region75: #{mlp_forward.1} parent=73 // pred_check
          %p784 = pneg %p76
        $region76: #{mlp_forward.1} parent=73 // pred_check_branch
          %786 = sbr.rel (%p784) target = $region78
        $region77: #{mlp_forward.1} parent=73 // pred_region
          _
        $region78: #{mlp_forward.1} parent=73 // pred_fallthru
          _
        %p787 = scmp.lt.s32.totalorder %s21, 0
        %s788 = scalar_select %p787, %s21, 0
        %s789 = smul.addr %s788, 8
        %s790 = smul.addr %s789, 4
        %s791 = scalar_lea.vmem %s0, %s790
        %p792 = pneg %p50
        %p793 = pneg %p47
        %s794 = sand.u32 %s63, 1
        %s795 = sand.u32 %s63, 1
        %s796 = smul.addr %s795, 1024
        %s797 = scalar_lea.vmem [#allocation3], %s796
        %p798 = pneg %p76
        %p799 = pneg %p73
        %s800 = smul.u32 2, %s22
        %p801 = scmp.lt.s32.totalorder %s800, 3
        %s802 = scalar_select %p801, %s800, 3
        %s803 = scalar_lea.vmem %s2, %s802
        %p804 = pneg %p102
        %p805 = pneg %p99
        %s806 = smul.u32 32, %s22
        %p807 = scmp.lt.s32.totalorder %s806, 63
        %s808 = scalar_select %p807, %s806, 63
        %s809 = smul.addr %s808, 4
        %s810 = scalar_lea.vmem %s3, %s809
        %p811 = pneg %p128
        %p812 = pneg %p125
        %p813 = pneg %p149
        %p814 = pneg %p146
        %p815 = pneg %p175
        %p816 = pneg %p172
        %p817 = scmp.lt.s32.totalorder %s21, 0
        %s818 = scalar_select %p817, %s21, 0
        %s819 = smul.addr %s818, 8
        %s820 = smul.addr %s819, 4
        %s821 = scalar_lea.vmem %s0, %s820
        %s822 = smul.u32 2, %s22
        %s823 = smul.u32 2, %s22
        %p824 = scmp.lt.s32.totalorder %s823, 3
        %s825 = scalar_select %p824, %s823, 3
        %s826 = scalar_lea.vmem %s2, %s825
        %s827 = smul.u32 2, %s22
        %s828 = smul.u32 32, %s22
        %p829 = scmp.lt.s32.totalorder %s828, 63
        %s830 = scalar_select %p829, %s828, 63
        %s831 = smul.addr %s830, 4
        %s832 = scalar_lea.vmem %s3, %s831
        %s833 = smul.u32 32, %s22
        %p835 = scmp.eq.s32.totalorder %s22, 0
        // Predicated region
        $region79: #{mlp_forward.1} parent=73 // pred_check
          %p836 = pneg %p835
        $region80: #{mlp_forward.1} parent=73 // pred_check_branch
          %838 = sbr.rel (%p836) target = $region82
        $region81: #{mlp_forward.1} parent=73 // pred_region
          %839 = vst [vmem:[#allocation2] sm:$0xff] 0.0
        $region82: #{mlp_forward.1} parent=73 // pred_fallthru
          _
        %v840 = vld [vmem:[%s821] sm:$0xff]
        %v841 = vld [vmem:[%s821 + $0x8] sm:$0xff]
        %v842 = vld [vmem:[%s821 + $0x10] sm:$0xff]
        %v843 = vld [vmem:[%s821 + $0x18] sm:$0xff]
        %v844 = vld [vmem:[%s783] sm:$0xff]
        %v845 = vld [vmem:[%s783 + $0x8] sm:$0xff]
        %v846 = vld [vmem:[%s783 + $0x10] sm:$0xff]
        %v847 = vld [vmem:[%s783 + $0x18] sm:$0xff]
        %v848 = vld [vmem:[%s783 + $0x20] sm:$0xff]
        %v849 = vld [vmem:[%s783 + $0x28] sm:$0xff]
        %v850 = vld [vmem:[%s783 + $0x30] sm:$0xff]
        %v851 = vld [vmem:[%s783 + $0x38] sm:$0xff]
        %v852 = vld [vmem:[%s783 + $0x40] sm:$0xff]
        %v853 = vld [vmem:[%s783 + $0x48] sm:$0xff]
        %v854 = vld [vmem:[%s783 + $0x50] sm:$0xff]
        %v855 = vld [vmem:[%s783 + $0x58] sm:$0xff]
        %v856 = vld [vmem:[%s783 + $0x60] sm:$0xff]
        %v857 = vld [vmem:[%s783 + $0x68] sm:$0xff]
        %v858 = vld [vmem:[%s783 + $0x70] sm:$0xff]
        %v859 = vld [vmem:[%s783 + $0x78] sm:$0xff]
        %v860 = vld [vmem:[%s783 + $0x80] sm:$0xff]
        %v861 = vld [vmem:[%s783 + $0x88] sm:$0xff]
        %v862 = vld [vmem:[%s783 + $0x90] sm:$0xff]
        %v863 = vld [vmem:[%s783 + $0x98] sm:$0xff]
        %v864 = vld [vmem:[%s783 + $0xa0] sm:$0xff]
        %v865 = vld [vmem:[%s783 + $0xa8] sm:$0xff]
        %v866 = vld [vmem:[%s783 + $0xb0] sm:$0xff]
        %v867 = vld [vmem:[%s783 + $0xb8] sm:$0xff]
        %v868 = vld [vmem:[%s783 + $0xc0] sm:$0xff]
        %v869 = vld [vmem:[%s783 + $0xc8] sm:$0xff]
        %v870 = vld [vmem:[%s783 + $0xd0] sm:$0xff]
        %v871 = vld [vmem:[%s783 + $0xd8] sm:$0xff]
        %v872 = vld [vmem:[%s783 + $0xe0] sm:$0xff]
        %v873 = vld [vmem:[%s783 + $0xe8] sm:$0xff]
        %v874 = vld [vmem:[%s783 + $0xf0] sm:$0xff]
        %v875 = vld [vmem:[%s783 + $0xf8] sm:$0xff]
        %v876 = vld [vmem:[%s783 + $0x100] sm:$0xff]
        %v877 = vld [vmem:[%s783 + $0x108] sm:$0xff]
        %v878 = vld [vmem:[%s783 + $0x110] sm:$0xff]
        %v879 = vld [vmem:[%s783 + $0x118] sm:$0xff]
        %v880 = vld [vmem:[%s783 + $0x120] sm:$0xff]
        %v881 = vld [vmem:[%s783 + $0x128] sm:$0xff]
        %v882 = vld [vmem:[%s783 + $0x130] sm:$0xff]
        %v883 = vld [vmem:[%s783 + $0x138] sm:$0xff]
        %v884 = vld [vmem:[%s783 + $0x140] sm:$0xff]
        %v885 = vld [vmem:[%s783 + $0x148] sm:$0xff]
        %v886 = vld [vmem:[%s783 + $0x150] sm:$0xff]
        %v887 = vld [vmem:[%s783 + $0x158] sm:$0xff]
        %v888 = vld [vmem:[%s783 + $0x160] sm:$0xff]
        %v889 = vld [vmem:[%s783 + $0x168] sm:$0xff]
        %v890 = vld [vmem:[%s783 + $0x170] sm:$0xff]
        %v891 = vld [vmem:[%s783 + $0x178] sm:$0xff]
        %v892 = vld [vmem:[%s783 + $0x180] sm:$0xff]
        %v893 = vld [vmem:[%s783 + $0x188] sm:$0xff]
        %v894 = vld [vmem:[%s783 + $0x190] sm:$0xff]
        %v895 = vld [vmem:[%s783 + $0x198] sm:$0xff]
        %v896 = vld [vmem:[%s783 + $0x1a0] sm:$0xff]
        %v897 = vld [vmem:[%s783 + $0x1a8] sm:$0xff]
        %v898 = vld [vmem:[%s783 + $0x1b0] sm:$0xff]
        %v899 = vld [vmem:[%s783 + $0x1b8] sm:$0xff]
        %v900 = vld [vmem:[%s783 + $0x1c0] sm:$0xff]
        %v901 = vld [vmem:[%s783 + $0x1c8] sm:$0xff]
        %v902 = vld [vmem:[%s783 + $0x1d0] sm:$0xff]
        %v903 = vld [vmem:[%s783 + $0x1d8] sm:$0xff]
        %v904 = vld [vmem:[%s783 + $0x1e0] sm:$0xff]
        %v905 = vld [vmem:[%s783 + $0x1e8] sm:$0xff]
        %v906 = vld [vmem:[%s783 + $0x1f0] sm:$0xff]
        %v907 = vld [vmem:[%s783 + $0x1f8] sm:$0xff]
        %v908 = vld [vmem:[%s783 + $0x200] sm:$0xff]
        %v909 = vld [vmem:[%s783 + $0x208] sm:$0xff]
        %v910 = vld [vmem:[%s783 + $0x210] sm:$0xff]
        %v911 = vld [vmem:[%s783 + $0x218] sm:$0xff]
        %v912 = vld [vmem:[%s783 + $0x220] sm:$0xff]
        %v913 = vld [vmem:[%s783 + $0x228] sm:$0xff]
        %v914 = vld [vmem:[%s783 + $0x230] sm:$0xff]
        %v915 = vld [vmem:[%s783 + $0x238] sm:$0xff]
        %v916 = vld [vmem:[%s783 + $0x240] sm:$0xff]
        %v917 = vld [vmem:[%s783 + $0x248] sm:$0xff]
        %v918 = vld [vmem:[%s783 + $0x250] sm:$0xff]
        %v919 = vld [vmem:[%s783 + $0x258] sm:$0xff]
        %v920 = vld [vmem:[%s783 + $0x260] sm:$0xff]
        %v921 = vld [vmem:[%s783 + $0x268] sm:$0xff]
        %v922 = vld [vmem:[%s783 + $0x270] sm:$0xff]
        %v923 = vld [vmem:[%s783 + $0x278] sm:$0xff]
        %v924 = vld [vmem:[%s783 + $0x280] sm:$0xff]
        %v925 = vld [vmem:[%s783 + $0x288] sm:$0xff]
        %v926 = vld [vmem:[%s783 + $0x290] sm:$0xff]
        %v927 = vld [vmem:[%s783 + $0x298] sm:$0xff]
        %v928 = vld [vmem:[%s783 + $0x2a0] sm:$0xff]
        %v929 = vld [vmem:[%s783 + $0x2a8] sm:$0xff]
        %v930 = vld [vmem:[%s783 + $0x2b0] sm:$0xff]
        %v931 = vld [vmem:[%s783 + $0x2b8] sm:$0xff]
        %v932 = vld [vmem:[%s783 + $0x2c0] sm:$0xff]
        %v933 = vld [vmem:[%s783 + $0x2c8] sm:$0xff]
        %v934 = vld [vmem:[%s783 + $0x2d0] sm:$0xff]
        %v935 = vld [vmem:[%s783 + $0x2d8] sm:$0xff]
        %v936 = vld [vmem:[%s783 + $0x2e0] sm:$0xff]
        %v937 = vld [vmem:[%s783 + $0x2e8] sm:$0xff]
        %v938 = vld [vmem:[%s783 + $0x2f0] sm:$0xff]
        %v939 = vld [vmem:[%s783 + $0x2f8] sm:$0xff]
        %v940 = vld [vmem:[%s783 + $0x300] sm:$0xff]
        %v941 = vld [vmem:[%s783 + $0x308] sm:$0xff]
        %v942 = vld [vmem:[%s783 + $0x310] sm:$0xff]
        %v943 = vld [vmem:[%s783 + $0x318] sm:$0xff]
        %v944 = vld [vmem:[%s783 + $0x320] sm:$0xff]
        %v945 = vld [vmem:[%s783 + $0x328] sm:$0xff]
        %v946 = vld [vmem:[%s783 + $0x330] sm:$0xff]
        %v947 = vld [vmem:[%s783 + $0x338] sm:$0xff]
        %v948 = vld [vmem:[%s783 + $0x340] sm:$0xff]
        %v949 = vld [vmem:[%s783 + $0x348] sm:$0xff]
        %v950 = vld [vmem:[%s783 + $0x350] sm:$0xff]
        %v951 = vld [vmem:[%s783 + $0x358] sm:$0xff]
        %v952 = vld [vmem:[%s783 + $0x360] sm:$0xff]
        %v953 = vld [vmem:[%s783 + $0x368] sm:$0xff]
        %v954 = vld [vmem:[%s783 + $0x370] sm:$0xff]
        %v955 = vld [vmem:[%s783 + $0x378] sm:$0xff]
        %v956 = vld [vmem:[%s783 + $0x380] sm:$0xff]
        %v957 = vld [vmem:[%s783 + $0x388] sm:$0xff]
        %v958 = vld [vmem:[%s783 + $0x390] sm:$0xff]
        %v959 = vld [vmem:[%s783 + $0x398] sm:$0xff]
        %v960 = vld [vmem:[%s783 + $0x3a0] sm:$0xff]
        %v961 = vld [vmem:[%s783 + $0x3a8] sm:$0xff]
        %v962 = vld [vmem:[%s783 + $0x3b0] sm:$0xff]
        %v963 = vld [vmem:[%s783 + $0x3b8] sm:$0xff]
        %v964 = vld [vmem:[%s783 + $0x3c0] sm:$0xff]
        %v965 = vld [vmem:[%s783 + $0x3c8] sm:$0xff]
        %v966 = vld [vmem:[%s783 + $0x3d0] sm:$0xff]
        %v967 = vld [vmem:[%s783 + $0x3d8] sm:$0xff]
        %v968 = vld [vmem:[%s783 + $0x3e0] sm:$0xff]
        %v969 = vld [vmem:[%s783 + $0x3e8] sm:$0xff]
        %v970 = vld [vmem:[%s783 + $0x3f0] sm:$0xff]
        %v971 = vld [vmem:[%s783 + $0x3f8] sm:$0xff]
        %v972 = vld [vmem:[%s826] sm:$0x3]
        %v974 = vlaneseq
        %v975 = vshrl.u32 %v974, 7
        %v976 = vsub.s32 0, %v975
        %v977 = vrot.slane %v972, %v976
        %v978 = vlaneseq
        %v979 = vshrl.u32 %v978, 7
        %v980 = vsub.s32 1, %v979
        %v981 = vrot.slane %v972, %v980
        %v988 = vunpack.c.l.b16 %v840
        %v989 = vunpack.c.h.b16 %v840
        %v990 = vunpack.c.l.b16 %v841
        %v991 = vunpack.c.h.b16 %v841
        %v992 = vunpack.c.l.b16 %v842
        %v993 = vunpack.c.h.b16 %v842
        %v994 = vunpack.c.l.b16 %v843
        %v995 = vunpack.c.h.b16 %v843
        %v996 = vpack.c.b16 %v988, %v988
        %v997 = vpack.c.b16 %v989, %v989
        %v998 = vpack.c.b16 %v990, %v990
        %v999 = vpack.c.b16 %v991, %v991
        %v1000 = vpack.c.b16 %v992, %v992
        %v1001 = vpack.c.b16 %v993, %v993
        %v1002 = vpack.c.b16 %v994, %v994
        %v1003 = vpack.c.b16 %v995, %v995
        %v1140 = vunpack.c.l.b16 %v844
        %v1141 = vunpack.c.h.b16 %v844
        %v1142 = vunpack.c.l.b16 %v845
        %v1143 = vunpack.c.h.b16 %v845
        %v1144 = vunpack.c.l.b16 %v846
        %v1145 = vunpack.c.h.b16 %v846
        %v1146 = vunpack.c.l.b16 %v847
        %v1147 = vunpack.c.h.b16 %v847
        %v1148 = vunpack.c.l.b16 %v848
        %v1149 = vunpack.c.h.b16 %v848
        %v1150 = vunpack.c.l.b16 %v849
        %v1151 = vunpack.c.h.b16 %v849
        %v1152 = vunpack.c.l.b16 %v850
        %v1153 = vunpack.c.h.b16 %v850
        %v1154 = vunpack.c.l.b16 %v851
        %v1155 = vunpack.c.h.b16 %v851
        %v1156 = vunpack.c.l.b16 %v852
        %v1157 = vunpack.c.h.b16 %v852
        %v1158 = vunpack.c.l.b16 %v853
        %v1159 = vunpack.c.h.b16 %v853
        %v1160 = vunpack.c.l.b16 %v854
        %v1161 = vunpack.c.h.b16 %v854
        %v1162 = vunpack.c.l.b16 %v855
        %v1163 = vunpack.c.h.b16 %v855
        %v1164 = vunpack.c.l.b16 %v856
        %v1165 = vunpack.c.h.b16 %v856
        %v1166 = vunpack.c.l.b16 %v857
        %v1167 = vunpack.c.h.b16 %v857
        %v1168 = vunpack.c.l.b16 %v858
        %v1169 = vunpack.c.h.b16 %v858
        %v1170 = vunpack.c.l.b16 %v859
        %v1171 = vunpack.c.h.b16 %v859
        %v1172 = vunpack.c.l.b16 %v860
        %v1173 = vunpack.c.h.b16 %v860
        %v1174 = vunpack.c.l.b16 %v861
        %v1175 = vunpack.c.h.b16 %v861
        %v1176 = vunpack.c.l.b16 %v862
        %v1177 = vunpack.c.h.b16 %v862
        %v1178 = vunpack.c.l.b16 %v863
        %v1179 = vunpack.c.h.b16 %v863
        %v1180 = vunpack.c.l.b16 %v864
        %v1181 = vunpack.c.h.b16 %v864
        %v1182 = vunpack.c.l.b16 %v865
        %v1183 = vunpack.c.h.b16 %v865
        %v1184 = vunpack.c.l.b16 %v866
        %v1185 = vunpack.c.h.b16 %v866
        %v1186 = vunpack.c.l.b16 %v867
        %v1187 = vunpack.c.h.b16 %v867
        %v1188 = vunpack.c.l.b16 %v868
        %v1189 = vunpack.c.h.b16 %v868
        %v1190 = vunpack.c.l.b16 %v869
        %v1191 = vunpack.c.h.b16 %v869
        %v1192 = vunpack.c.l.b16 %v870
        %v1193 = vunpack.c.h.b16 %v870
        %v1194 = vunpack.c.l.b16 %v871
        %v1195 = vunpack.c.h.b16 %v871
        %v1196 = vunpack.c.l.b16 %v872
        %v1197 = vunpack.c.h.b16 %v872
        %v1198 = vunpack.c.l.b16 %v873
        %v1199 = vunpack.c.h.b16 %v873
        %v1200 = vunpack.c.l.b16 %v874
        %v1201 = vunpack.c.h.b16 %v874
        %v1202 = vunpack.c.l.b16 %v875
        %v1203 = vunpack.c.h.b16 %v875
        %v1204 = vunpack.c.l.b16 %v876
        %v1205 = vunpack.c.h.b16 %v876
        %v1206 = vunpack.c.l.b16 %v877
        %v1207 = vunpack.c.h.b16 %v877
        %v1208 = vunpack.c.l.b16 %v878
        %v1209 = vunpack.c.h.b16 %v878
        %v1210 = vunpack.c.l.b16 %v879
        %v1211 = vunpack.c.h.b16 %v879
        %v1212 = vunpack.c.l.b16 %v880
        %v1213 = vunpack.c.h.b16 %v880
        %v1214 = vunpack.c.l.b16 %v881
        %v1215 = vunpack.c.h.b16 %v881
        %v1216 = vunpack.c.l.b16 %v882
        %v1217 = vunpack.c.h.b16 %v882
        %v1218 = vunpack.c.l.b16 %v883
        %v1219 = vunpack.c.h.b16 %v883
        %v1220 = vunpack.c.l.b16 %v884
        %v1221 = vunpack.c.h.b16 %v884
        %v1222 = vunpack.c.l.b16 %v885
        %v1223 = vunpack.c.h.b16 %v885
        %v1224 = vunpack.c.l.b16 %v886
        %v1225 = vunpack.c.h.b16 %v886
        %v1226 = vunpack.c.l.b16 %v887
        %v1227 = vunpack.c.h.b16 %v887
        %v1228 = vunpack.c.l.b16 %v888
        %v1229 = vunpack.c.h.b16 %v888
        %v1230 = vunpack.c.l.b16 %v889
        %v1231 = vunpack.c.h.b16 %v889
        %v1232 = vunpack.c.l.b16 %v890
        %v1233 = vunpack.c.h.b16 %v890
        %v1234 = vunpack.c.l.b16 %v891
        %v1235 = vunpack.c.h.b16 %v891
        %v1236 = vunpack.c.l.b16 %v892
        %v1237 = vunpack.c.h.b16 %v892
        %v1238 = vunpack.c.l.b16 %v893
        %v1239 = vunpack.c.h.b16 %v893
        %v1240 = vunpack.c.l.b16 %v894
        %v1241 = vunpack.c.h.b16 %v894
        %v1242 = vunpack.c.l.b16 %v895
        %v1243 = vunpack.c.h.b16 %v895
        %v1244 = vunpack.c.l.b16 %v896
        %v1245 = vunpack.c.h.b16 %v896
        %v1246 = vunpack.c.l.b16 %v897
        %v1247 = vunpack.c.h.b16 %v897
        %v1248 = vunpack.c.l.b16 %v898
        %v1249 = vunpack.c.h.b16 %v898
        %v1250 = vunpack.c.l.b16 %v899
        %v1251 = vunpack.c.h.b16 %v899
        %v1252 = vunpack.c.l.b16 %v900
        %v1253 = vunpack.c.h.b16 %v900
        %v1254 = vunpack.c.l.b16 %v901
        %v1255 = vunpack.c.h.b16 %v901
        %v1256 = vunpack.c.l.b16 %v902
        %v1257 = vunpack.c.h.b16 %v902
        %v1258 = vunpack.c.l.b16 %v903
        %v1259 = vunpack.c.h.b16 %v903
        %v1260 = vunpack.c.l.b16 %v904
        %v1261 = vunpack.c.h.b16 %v904
        %v1262 = vunpack.c.l.b16 %v905
        %v1263 = vunpack.c.h.b16 %v905
        %v1264 = vunpack.c.l.b16 %v906
        %v1265 = vunpack.c.h.b16 %v906
        %v1266 = vunpack.c.l.b16 %v907
        %v1267 = vunpack.c.h.b16 %v907
        %v1268 = vunpack.c.l.b16 %v908
        %v1269 = vunpack.c.h.b16 %v908
        %v1270 = vunpack.c.l.b16 %v909
        %v1271 = vunpack.c.h.b16 %v909
        %v1272 = vunpack.c.l.b16 %v910
        %v1273 = vunpack.c.h.b16 %v910
        %v1274 = vunpack.c.l.b16 %v911
        %v1275 = vunpack.c.h.b16 %v911
        %v1276 = vunpack.c.l.b16 %v912
        %v1277 = vunpack.c.h.b16 %v912
        %v1278 = vunpack.c.l.b16 %v913
        %v1279 = vunpack.c.h.b16 %v913
        %v1280 = vunpack.c.l.b16 %v914
        %v1281 = vunpack.c.h.b16 %v914
        %v1282 = vunpack.c.l.b16 %v915
        %v1283 = vunpack.c.h.b16 %v915
        %v1284 = vunpack.c.l.b16 %v916
        %v1285 = vunpack.c.h.b16 %v916
        %v1286 = vunpack.c.l.b16 %v917
        %v1287 = vunpack.c.h.b16 %v917
        %v1288 = vunpack.c.l.b16 %v918
        %v1289 = vunpack.c.h.b16 %v918
        %v1290 = vunpack.c.l.b16 %v919
        %v1291 = vunpack.c.h.b16 %v919
        %v1292 = vunpack.c.l.b16 %v920
        %v1293 = vunpack.c.h.b16 %v920
        %v1294 = vunpack.c.l.b16 %v921
        %v1295 = vunpack.c.h.b16 %v921
        %v1296 = vunpack.c.l.b16 %v922
        %v1297 = vunpack.c.h.b16 %v922
        %v1298 = vunpack.c.l.b16 %v923
        %v1299 = vunpack.c.h.b16 %v923
        %v1300 = vunpack.c.l.b16 %v924
        %v1301 = vunpack.c.h.b16 %v924
        %v1302 = vunpack.c.l.b16 %v925
        %v1303 = vunpack.c.h.b16 %v925
        %v1304 = vunpack.c.l.b16 %v926
        %v1305 = vunpack.c.h.b16 %v926
        %v1306 = vunpack.c.l.b16 %v927
        %v1307 = vunpack.c.h.b16 %v927
        %v1308 = vunpack.c.l.b16 %v928
        %v1309 = vunpack.c.h.b16 %v928
        %v1310 = vunpack.c.l.b16 %v929
        %v1311 = vunpack.c.h.b16 %v929
        %v1312 = vunpack.c.l.b16 %v930
        %v1313 = vunpack.c.h.b16 %v930
        %v1314 = vunpack.c.l.b16 %v931
        %v1315 = vunpack.c.h.b16 %v931
        %v1316 = vunpack.c.l.b16 %v932
        %v1317 = vunpack.c.h.b16 %v932
        %v1318 = vunpack.c.l.b16 %v933
        %v1319 = vunpack.c.h.b16 %v933
        %v1320 = vunpack.c.l.b16 %v934
        %v1321 = vunpack.c.h.b16 %v934
        %v1322 = vunpack.c.l.b16 %v935
        %v1323 = vunpack.c.h.b16 %v935
        %v1324 = vunpack.c.l.b16 %v936
        %v1325 = vunpack.c.h.b16 %v936
        %v1326 = vunpack.c.l.b16 %v937
        %v1327 = vunpack.c.h.b16 %v937
        %v1328 = vunpack.c.l.b16 %v938
        %v1329 = vunpack.c.h.b16 %v938
        %v1330 = vunpack.c.l.b16 %v939
        %v1331 = vunpack.c.h.b16 %v939
        %v1332 = vunpack.c.l.b16 %v940
        %v1333 = vunpack.c.h.b16 %v940
        %v1334 = vunpack.c.l.b16 %v941
        %v1335 = vunpack.c.h.b16 %v941
        %v1336 = vunpack.c.l.b16 %v942
        %v1337 = vunpack.c.h.b16 %v942
        %v1338 = vunpack.c.l.b16 %v943
        %v1339 = vunpack.c.h.b16 %v943
        %v1340 = vunpack.c.l.b16 %v944
        %v1341 = vunpack.c.h.b16 %v944
        %v1342 = vunpack.c.l.b16 %v945
        %v1343 = vunpack.c.h.b16 %v945
        %v1344 = vunpack.c.l.b16 %v946
        %v1345 = vunpack.c.h.b16 %v946
        %v1346 = vunpack.c.l.b16 %v947
        %v1347 = vunpack.c.h.b16 %v947
        %v1348 = vunpack.c.l.b16 %v948
        %v1349 = vunpack.c.h.b16 %v948
        %v1350 = vunpack.c.l.b16 %v949
        %v1351 = vunpack.c.h.b16 %v949
        %v1352 = vunpack.c.l.b16 %v950
        %v1353 = vunpack.c.h.b16 %v950
        %v1354 = vunpack.c.l.b16 %v951
        %v1355 = vunpack.c.h.b16 %v951
        %v1356 = vunpack.c.l.b16 %v952
        %v1357 = vunpack.c.h.b16 %v952
        %v1358 = vunpack.c.l.b16 %v953
        %v1359 = vunpack.c.h.b16 %v953
        %v1360 = vunpack.c.l.b16 %v954
        %v1361 = vunpack.c.h.b16 %v954
        %v1362 = vunpack.c.l.b16 %v955
        %v1363 = vunpack.c.h.b16 %v955
        %v1364 = vunpack.c.l.b16 %v956
        %v1365 = vunpack.c.h.b16 %v956
        %v1366 = vunpack.c.l.b16 %v957
        %v1367 = vunpack.c.h.b16 %v957
        %v1368 = vunpack.c.l.b16 %v958
        %v1369 = vunpack.c.h.b16 %v958
        %v1370 = vunpack.c.l.b16 %v959
        %v1371 = vunpack.c.h.b16 %v959
        %v1372 = vunpack.c.l.b16 %v960
        %v1373 = vunpack.c.h.b16 %v960
        %v1374 = vunpack.c.l.b16 %v961
        %v1375 = vunpack.c.h.b16 %v961
        %v1376 = vunpack.c.l.b16 %v962
        %v1377 = vunpack.c.h.b16 %v962
        %v1378 = vunpack.c.l.b16 %v963
        %v1379 = vunpack.c.h.b16 %v963
        %v1380 = vunpack.c.l.b16 %v964
        %v1381 = vunpack.c.h.b16 %v964
        %v1382 = vunpack.c.l.b16 %v965
        %v1383 = vunpack.c.h.b16 %v965
        %v1384 = vunpack.c.l.b16 %v966
        %v1385 = vunpack.c.h.b16 %v966
        %v1386 = vunpack.c.l.b16 %v967
        %v1387 = vunpack.c.h.b16 %v967
        %v1388 = vunpack.c.l.b16 %v968
        %v1389 = vunpack.c.h.b16 %v968
        %v1390 = vunpack.c.l.b16 %v969
        %v1391 = vunpack.c.h.b16 %v969
        %v1392 = vunpack.c.l.b16 %v970
        %v1393 = vunpack.c.h.b16 %v970
        %v1394 = vunpack.c.l.b16 %v971
        %v1395 = vunpack.c.h.b16 %v971
        %v1396 = vpack.c.b16 %v1142, %v1140
        %v1397 = vpack.c.b16 %v1143, %v1141
        %v1398 = vpack.c.b16 %v1146, %v1144
        %v1399 = vpack.c.b16 %v1147, %v1145
        %v1400 = vpack.c.b16 %v1150, %v1148
        %v1401 = vpack.c.b16 %v1151, %v1149
        %v1402 = vpack.c.b16 %v1154, %v1152
        %v1403 = vpack.c.b16 %v1155, %v1153
        %v1404 = vpack.c.b16 %v1158, %v1156
        %v1405 = vpack.c.b16 %v1159, %v1157
        %v1406 = vpack.c.b16 %v1162, %v1160
        %v1407 = vpack.c.b16 %v1163, %v1161
        %v1408 = vpack.c.b16 %v1166, %v1164
        %v1409 = vpack.c.b16 %v1167, %v1165
        %v1410 = vpack.c.b16 %v1170, %v1168
        %v1411 = vpack.c.b16 %v1171, %v1169
        %v1412 = vpack.c.b16 %v1174, %v1172
        %v1413 = vpack.c.b16 %v1175, %v1173
        %v1414 = vpack.c.b16 %v1178, %v1176
        %v1415 = vpack.c.b16 %v1179, %v1177
        %v1416 = vpack.c.b16 %v1182, %v1180
        %v1417 = vpack.c.b16 %v1183, %v1181
        %v1418 = vpack.c.b16 %v1186, %v1184
        %v1419 = vpack.c.b16 %v1187, %v1185
        %v1420 = vpack.c.b16 %v1190, %v1188
        %v1421 = vpack.c.b16 %v1191, %v1189
        %v1422 = vpack.c.b16 %v1194, %v1192
        %v1423 = vpack.c.b16 %v1195, %v1193
        %v1424 = vpack.c.b16 %v1198, %v1196
        %v1425 = vpack.c.b16 %v1199, %v1197
        %v1426 = vpack.c.b16 %v1202, %v1200
        %v1427 = vpack.c.b16 %v1203, %v1201
        %v1428 = vpack.c.b16 %v1206, %v1204
        %v1429 = vpack.c.b16 %v1207, %v1205
        %v1430 = vpack.c.b16 %v1210, %v1208
        %v1431 = vpack.c.b16 %v1211, %v1209
        %v1432 = vpack.c.b16 %v1214, %v1212
        %v1433 = vpack.c.b16 %v1215, %v1213
        %v1434 = vpack.c.b16 %v1218, %v1216
        %v1435 = vpack.c.b16 %v1219, %v1217
        %v1436 = vpack.c.b16 %v1222, %v1220
        %v1437 = vpack.c.b16 %v1223, %v1221
        %v1438 = vpack.c.b16 %v1226, %v1224
        %v1439 = vpack.c.b16 %v1227, %v1225
        %v1440 = vpack.c.b16 %v1230, %v1228
        %v1441 = vpack.c.b16 %v1231, %v1229
        %v1442 = vpack.c.b16 %v1234, %v1232
        %v1443 = vpack.c.b16 %v1235, %v1233
        %v1444 = vpack.c.b16 %v1238, %v1236
        %v1445 = vpack.c.b16 %v1239, %v1237
        %v1446 = vpack.c.b16 %v1242, %v1240
        %v1447 = vpack.c.b16 %v1243, %v1241
        %v1448 = vpack.c.b16 %v1246, %v1244
        %v1449 = vpack.c.b16 %v1247, %v1245
        %v1450 = vpack.c.b16 %v1250, %v1248
        %v1451 = vpack.c.b16 %v1251, %v1249
        %v1452 = vpack.c.b16 %v1254, %v1252
        %v1453 = vpack.c.b16 %v1255, %v1253
        %v1454 = vpack.c.b16 %v1258, %v1256
        %v1455 = vpack.c.b16 %v1259, %v1257
        %v1456 = vpack.c.b16 %v1262, %v1260
        %v1457 = vpack.c.b16 %v1263, %v1261
        %v1458 = vpack.c.b16 %v1266, %v1264
        %v1459 = vpack.c.b16 %v1267, %v1265
        %v1460 = vpack.c.b16 %v1270, %v1268
        %v1461 = vpack.c.b16 %v1271, %v1269
        %v1462 = vpack.c.b16 %v1274, %v1272
        %v1463 = vpack.c.b16 %v1275, %v1273
        %v1464 = vpack.c.b16 %v1278, %v1276
        %v1465 = vpack.c.b16 %v1279, %v1277
        %v1466 = vpack.c.b16 %v1282, %v1280
        %v1467 = vpack.c.b16 %v1283, %v1281
        %v1468 = vpack.c.b16 %v1286, %v1284
        %v1469 = vpack.c.b16 %v1287, %v1285
        %v1470 = vpack.c.b16 %v1290, %v1288
        %v1471 = vpack.c.b16 %v1291, %v1289
        %v1472 = vpack.c.b16 %v1294, %v1292
        %v1473 = vpack.c.b16 %v1295, %v1293
        %v1474 = vpack.c.b16 %v1298, %v1296
        %v1475 = vpack.c.b16 %v1299, %v1297
        %v1476 = vpack.c.b16 %v1302, %v1300
        %v1477 = vpack.c.b16 %v1303, %v1301
        %v1478 = vpack.c.b16 %v1306, %v1304
        %v1479 = vpack.c.b16 %v1307, %v1305
        %v1480 = vpack.c.b16 %v1310, %v1308
        %v1481 = vpack.c.b16 %v1311, %v1309
        %v1482 = vpack.c.b16 %v1314, %v1312
        %v1483 = vpack.c.b16 %v1315, %v1313
        %v1484 = vpack.c.b16 %v1318, %v1316
        %v1485 = vpack.c.b16 %v1319, %v1317
        %v1486 = vpack.c.b16 %v1322, %v1320
        %v1487 = vpack.c.b16 %v1323, %v1321
        %v1488 = vpack.c.b16 %v1326, %v1324
        %v1489 = vpack.c.b16 %v1327, %v1325
        %v1490 = vpack.c.b16 %v1330, %v1328
        %v1491 = vpack.c.b16 %v1331, %v1329
        %v1492 = vpack.c.b16 %v1334, %v1332
        %v1493 = vpack.c.b16 %v1335, %v1333
        %v1494 = vpack.c.b16 %v1338, %v1336
        %v1495 = vpack.c.b16 %v1339, %v1337
        %v1496 = vpack.c.b16 %v1342, %v1340
        %v1497 = vpack.c.b16 %v1343, %v1341
        %v1498 = vpack.c.b16 %v1346, %v1344
        %v1499 = vpack.c.b16 %v1347, %v1345
        %v1500 = vpack.c.b16 %v1350, %v1348
        %v1501 = vpack.c.b16 %v1351, %v1349
        %v1502 = vpack.c.b16 %v1354, %v1352
        %v1503 = vpack.c.b16 %v1355, %v1353
        %v1504 = vpack.c.b16 %v1358, %v1356
        %v1505 = vpack.c.b16 %v1359, %v1357
        %v1506 = vpack.c.b16 %v1362, %v1360
        %v1507 = vpack.c.b16 %v1363, %v1361
        %v1508 = vpack.c.b16 %v1366, %v1364
        %v1509 = vpack.c.b16 %v1367, %v1365
        %v1510 = vpack.c.b16 %v1370, %v1368
        %v1511 = vpack.c.b16 %v1371, %v1369
        %v1512 = vpack.c.b16 %v1374, %v1372
        %v1513 = vpack.c.b16 %v1375, %v1373
        %v1514 = vpack.c.b16 %v1378, %v1376
        %v1515 = vpack.c.b16 %v1379, %v1377
        %v1516 = vpack.c.b16 %v1382, %v1380
        %v1517 = vpack.c.b16 %v1383, %v1381
        %v1518 = vpack.c.b16 %v1386, %v1384
        %v1519 = vpack.c.b16 %v1387, %v1385
        %v1520 = vpack.c.b16 %v1390, %v1388
        %v1521 = vpack.c.b16 %v1391, %v1389
        %v1522 = vpack.c.b16 %v1394, %v1392
        %v1523 = vpack.c.b16 %v1395, %v1393
        %1652 = vmatprep.subr.bf16.mxu0 %v1411
        %1653 = vmatpush1.bf16.msra.mxu0 %v1410
        %1654 = vmatprep.subr.bf16.mxu0 %v1409
        %1655 = vmatpush1.bf16.msra.mxu0 %v1408
        %1656 = vmatprep.subr.bf16.mxu0 %v1407
        %1657 = vmatpush1.bf16.msra.mxu0 %v1406
        %1658 = vmatprep.subr.bf16.mxu0 %v1405
        %1659 = vmatpush1.bf16.msra.mxu0 %v1404
        %1660 = vmatprep.subr.bf16.mxu0 %v1403
        %1661 = vmatpush1.bf16.msra.mxu0 %v1402
        %1662 = vmatprep.subr.bf16.mxu0 %v1401
        %1663 = vmatpush1.bf16.msra.mxu0 %v1400
        %1664 = vmatprep.subr.bf16.mxu0 %v1399
        %1665 = vmatpush1.bf16.msra.mxu0 %v1398
        %1666 = vmatprep.subr.bf16.mxu0 %v1397
        %1667 = vmatpush1.bf16.msra.mxu0 %v1396
        %1668 = vmatprep.subr.bf16.mxu0 %v1427
        %1669 = vmatpush2.bf16.msra.mxu0 %v1426
        %1670 = vmatprep.subr.bf16.mxu0 %v1425
        %1671 = vmatpush2.bf16.msra.mxu0 %v1424
        %1672 = vmatprep.subr.bf16.mxu0 %v1423
        %1673 = vmatpush2.bf16.msra.mxu0 %v1422
        %1674 = vmatprep.subr.bf16.mxu0 %v1421
        %1675 = vmatpush2.bf16.msra.mxu0 %v1420
        %1676 = vmatprep.subr.bf16.mxu0 %v1419
        %1677 = vmatpush2.bf16.msra.mxu0 %v1418
        %1678 = vmatprep.subr.bf16.mxu0 %v1417
        %1679 = vmatpush2.bf16.msra.mxu0 %v1416
        %1680 = vmatprep.subr.bf16.mxu0 %v1415
        %1681 = vmatpush2.bf16.msra.mxu0 %v1414
        %1682 = vmatprep.subr.bf16.mxu0 %v1413
        %1683 = vmatpush2.bf16.msra.mxu0 %v1412
        %1684 = vmatprep.mubr.bf16.mxu0 %v997
        %1685 = vmatmul.mubr.bf16.gmra.mxu0 %v996
        %v1686 = vpop.f32.mrf.mxu0
        %v1687 = vadd.f32 %v977, %v1686
        %v1688 = vpop.f32.mrf.mxu0
        %v1689 = vadd.f32 %v981, %v1688
        %v1690 = vpop.f32.mrf.mxu0
        %v1691 = vpop.f32.mrf.mxu0
        %1692 = vdwg.mxu0
        %1693 = vmatprep.subr.bf16.mxu0 %v1443
        %1694 = vmatpush1.bf16.msra.mxu0 %v1442
        %1695 = vmatprep.subr.bf16.mxu0 %v1441
        %1696 = vmatpush1.bf16.msra.mxu0 %v1440
        %1697 = vmatprep.subr.bf16.mxu0 %v1439
        %1698 = vmatpush1.bf16.msra.mxu0 %v1438
        %1699 = vmatprep.subr.bf16.mxu0 %v1437
        %1700 = vmatpush1.bf16.msra.mxu0 %v1436
        %1701 = vmatprep.subr.bf16.mxu0 %v1435
        %1702 = vmatpush1.bf16.msra.mxu0 %v1434
        %1703 = vmatprep.subr.bf16.mxu0 %v1433
        %1704 = vmatpush1.bf16.msra.mxu0 %v1432
        %1705 = vmatprep.subr.bf16.mxu0 %v1431
        %1706 = vmatpush1.bf16.msra.mxu0 %v1430
        %1707 = vmatprep.subr.bf16.mxu0 %v1429
        %1708 = vmatpush1.bf16.msra.mxu0 %v1428
        %1709 = vmatprep.subr.bf16.mxu0 %v1459
        %1710 = vmatpush2.bf16.msra.mxu0 %v1458
        %1711 = vmatprep.subr.bf16.mxu0 %v1457
        %1712 = vmatpush2.bf16.msra.mxu0 %v1456
        %1713 = vmatprep.subr.bf16.mxu0 %v1455
        %1714 = vmatpush2.bf16.msra.mxu0 %v1454
        %1715 = vmatprep.subr.bf16.mxu0 %v1453
        %1716 = vmatpush2.bf16.msra.mxu0 %v1452
        %1717 = vmatprep.subr.bf16.mxu0 %v1451
        %1718 = vmatpush2.bf16.msra.mxu0 %v1450
        %1719 = vmatprep.subr.bf16.mxu0 %v1449
        %1720 = vmatpush2.bf16.msra.mxu0 %v1448
        %1721 = vmatprep.subr.bf16.mxu0 %v1447
        %1722 = vmatpush2.bf16.msra.mxu0 %v1446
        %1723 = vmatprep.subr.bf16.mxu0 %v1445
        %1724 = vmatpush2.bf16.msra.mxu0 %v1444
        %1725 = vmatprep.mubr.bf16.mxu0 %v999
        %1726 = vmatmul.mubr.bf16.gmra.mxu0 %v998
        %v1727 = vpop.f32.mrf.mxu0
        %v1728 = vadd.f32 %v1687, %v1727
        %v1729 = vpop.f32.mrf.mxu0
        %v1730 = vadd.f32 %v1689, %v1729
        %v1731 = vpop.f32.mrf.mxu0
        %v1732 = vpop.f32.mrf.mxu0
        %1733 = vdwg.mxu0
        %1734 = vmatprep.subr.bf16.mxu0 %v1475
        %1735 = vmatpush1.bf16.msra.mxu0 %v1474
        %1736 = vmatprep.subr.bf16.mxu0 %v1473
        %1737 = vmatpush1.bf16.msra.mxu0 %v1472
        %1738 = vmatprep.subr.bf16.mxu0 %v1471
        %1739 = vmatpush1.bf16.msra.mxu0 %v1470
        %1740 = vmatprep.subr.bf16.mxu0 %v1469
        %1741 = vmatpush1.bf16.msra.mxu0 %v1468
        %1742 = vmatprep.subr.bf16.mxu0 %v1467
        %1743 = vmatpush1.bf16.msra.mxu0 %v1466
        %1744 = vmatprep.subr.bf16.mxu0 %v1465
        %1745 = vmatpush1.bf16.msra.mxu0 %v1464
        %1746 = vmatprep.subr.bf16.mxu0 %v1463
        %1747 = vmatpush1.bf16.msra.mxu0 %v1462
        %1748 = vmatprep.subr.bf16.mxu0 %v1461
        %1749 = vmatpush1.bf16.msra.mxu0 %v1460
        %1750 = vmatprep.subr.bf16.mxu0 %v1491
        %1751 = vmatpush2.bf16.msra.mxu0 %v1490
        %1752 = vmatprep.subr.bf16.mxu0 %v1489
        %1753 = vmatpush2.bf16.msra.mxu0 %v1488
        %1754 = vmatprep.subr.bf16.mxu0 %v1487
        %1755 = vmatpush2.bf16.msra.mxu0 %v1486
        %1756 = vmatprep.subr.bf16.mxu0 %v1485
        %1757 = vmatpush2.bf16.msra.mxu0 %v1484
        %1758 = vmatprep.subr.bf16.mxu0 %v1483
        %1759 = vmatpush2.bf16.msra.mxu0 %v1482
        %1760 = vmatprep.subr.bf16.mxu0 %v1481
        %1761 = vmatpush2.bf16.msra.mxu0 %v1480
        %1762 = vmatprep.subr.bf16.mxu0 %v1479
        %1763 = vmatpush2.bf16.msra.mxu0 %v1478
        %1764 = vmatprep.subr.bf16.mxu0 %v1477
        %1765 = vmatpush2.bf16.msra.mxu0 %v1476
        %1766 = vmatprep.mubr.bf16.mxu0 %v1001
        %1767 = vmatmul.mubr.bf16.gmra.mxu0 %v1000
        %v1768 = vpop.f32.mrf.mxu0
        %v1769 = vadd.f32 %v1728, %v1768
        %v1770 = vpop.f32.mrf.mxu0
        %v1771 = vadd.f32 %v1730, %v1770
        %v1772 = vpop.f32.mrf.mxu0
        %v1773 = vpop.f32.mrf.mxu0
        %1774 = vdwg.mxu0
        %1775 = vmatprep.subr.bf16.mxu0 %v1507
        %1776 = vmatpush1.bf16.msra.mxu0 %v1506
        %1777 = vmatprep.subr.bf16.mxu0 %v1505
        %1778 = vmatpush1.bf16.msra.mxu0 %v1504
        %1779 = vmatprep.subr.bf16.mxu0 %v1503
        %1780 = vmatpush1.bf16.msra.mxu0 %v1502
        %1781 = vmatprep.subr.bf16.mxu0 %v1501
        %1782 = vmatpush1.bf16.msra.mxu0 %v1500
        %1783 = vmatprep.subr.bf16.mxu0 %v1499
        %1784 = vmatpush1.bf16.msra.mxu0 %v1498
        %1785 = vmatprep.subr.bf16.mxu0 %v1497
        %1786 = vmatpush1.bf16.msra.mxu0 %v1496
        %1787 = vmatprep.subr.bf16.mxu0 %v1495
        %1788 = vmatpush1.bf16.msra.mxu0 %v1494
        %1789 = vmatprep.subr.bf16.mxu0 %v1493
        %1790 = vmatpush1.bf16.msra.mxu0 %v1492
        %1791 = vmatprep.subr.bf16.mxu0 %v1523
        %1792 = vmatpush2.bf16.msra.mxu0 %v1522
        %1793 = vmatprep.subr.bf16.mxu0 %v1521
        %1794 = vmatpush2.bf16.msra.mxu0 %v1520
        %1795 = vmatprep.subr.bf16.mxu0 %v1519
        %1796 = vmatpush2.bf16.msra.mxu0 %v1518
        %1797 = vmatprep.subr.bf16.mxu0 %v1517
        %1798 = vmatpush2.bf16.msra.mxu0 %v1516
        %1799 = vmatprep.subr.bf16.mxu0 %v1515
        %1800 = vmatpush2.bf16.msra.mxu0 %v1514
        %1801 = vmatprep.subr.bf16.mxu0 %v1513
        %1802 = vmatpush2.bf16.msra.mxu0 %v1512
        %1803 = vmatprep.subr.bf16.mxu0 %v1511
        %1804 = vmatpush2.bf16.msra.mxu0 %v1510
        %1805 = vmatprep.subr.bf16.mxu0 %v1509
        %1806 = vmatpush2.bf16.msra.mxu0 %v1508
        %1807 = vmatprep.mubr.bf16.mxu0 %v1003
        %1808 = vmatmul.mubr.bf16.gmra.mxu0 %v1002
        %v1809 = vpop.f32.mrf.mxu0
        %v1810 = vadd.f32 %v1769, %v1809
        %v1811 = vpop.f32.mrf.mxu0
        %v1812 = vadd.f32 %v1771, %v1811
        %v1813 = vpop.f32.mrf.mxu0
        %v1814 = vpop.f32.mrf.mxu0
        %1815 = vdwg.mxu0
        %v1816 = vmax.f32 %v1810, 0.0
        %v1817 = vmax.f32 %v1812, 0.0
        %v1818 = vld [vmem:[#allocation2] sm:$0xff]
        %v1819 = vpack.c.bf16 %v1816, %v1816
        %v1820 = vpack.c.bf16 %v1817, %v1817
        %v1821 = vld [vmem:[%s832] sm:$0xf]
        %v1822 = vld [vmem:[%s832 + $0x4] sm:$0xf]
        %v1823 = vld [vmem:[%s832 + $0x8] sm:$0xf]
        %v1824 = vld [vmem:[%s832 + $0xc] sm:$0xf]
        %v1825 = vld [vmem:[%s832 + $0x10] sm:$0xf]
        %v1826 = vld [vmem:[%s832 + $0x14] sm:$0xf]
        %v1827 = vld [vmem:[%s832 + $0x18] sm:$0xf]
        %v1828 = vld [vmem:[%s832 + $0x1c] sm:$0xf]
        %v1829 = vld [vmem:[%s832 + $0x20] sm:$0xf]
        %v1830 = vld [vmem:[%s832 + $0x24] sm:$0xf]
        %v1831 = vld [vmem:[%s832 + $0x28] sm:$0xf]
        %v1832 = vld [vmem:[%s832 + $0x2c] sm:$0xf]
        %v1833 = vld [vmem:[%s832 + $0x30] sm:$0xf]
        %v1834 = vld [vmem:[%s832 + $0x34] sm:$0xf]
        %v1835 = vld [vmem:[%s832 + $0x38] sm:$0xf]
        %v1836 = vld [vmem:[%s832 + $0x3c] sm:$0xf]
        %v1837 = vld [vmem:[%s832 + $0x40] sm:$0xf]
        %v1838 = vld [vmem:[%s832 + $0x44] sm:$0xf]
        %v1839 = vld [vmem:[%s832 + $0x48] sm:$0xf]
        %v1840 = vld [vmem:[%s832 + $0x4c] sm:$0xf]
        %v1841 = vld [vmem:[%s832 + $0x50] sm:$0xf]
        %v1842 = vld [vmem:[%s832 + $0x54] sm:$0xf]
        %v1843 = vld [vmem:[%s832 + $0x58] sm:$0xf]
        %v1844 = vld [vmem:[%s832 + $0x5c] sm:$0xf]
        %v1845 = vld [vmem:[%s832 + $0x60] sm:$0xf]
        %v1846 = vld [vmem:[%s832 + $0x64] sm:$0xf]
        %v1847 = vld [vmem:[%s832 + $0x68] sm:$0xf]
        %v1848 = vld [vmem:[%s832 + $0x6c] sm:$0xf]
        %v1849 = vld [vmem:[%s832 + $0x70] sm:$0xf]
        %v1850 = vld [vmem:[%s832 + $0x74] sm:$0xf]
        %v1851 = vld [vmem:[%s832 + $0x78] sm:$0xf]
        %v1852 = vld [vmem:[%s832 + $0x7c] sm:$0xf]
        %v1885 = vunpack.c.l.b16 %v1821
        %v1886 = vunpack.c.l.b16 %v1822
        %v1887 = vunpack.c.l.b16 %v1823
        %v1888 = vunpack.c.l.b16 %v1824
        %v1889 = vunpack.c.l.b16 %v1825
        %v1890 = vunpack.c.l.b16 %v1826
        %v1891 = vunpack.c.l.b16 %v1827
        %v1892 = vunpack.c.l.b16 %v1828
        %v1893 = vunpack.c.l.b16 %v1829
        %v1894 = vunpack.c.l.b16 %v1830
        %v1895 = vunpack.c.l.b16 %v1831
        %v1896 = vunpack.c.l.b16 %v1832
        %v1897 = vunpack.c.l.b16 %v1833
        %v1898 = vunpack.c.l.b16 %v1834
        %v1899 = vunpack.c.l.b16 %v1835
        %v1900 = vunpack.c.l.b16 %v1836
        %v1901 = vunpack.c.l.b16 %v1837
        %v1902 = vunpack.c.l.b16 %v1838
        %v1903 = vunpack.c.l.b16 %v1839
        %v1904 = vunpack.c.l.b16 %v1840
        %v1905 = vunpack.c.l.b16 %v1841
        %v1906 = vunpack.c.l.b16 %v1842
        %v1907 = vunpack.c.l.b16 %v1843
        %v1908 = vunpack.c.l.b16 %v1844
        %v1909 = vunpack.c.l.b16 %v1845
        %v1910 = vunpack.c.l.b16 %v1846
        %v1911 = vunpack.c.l.b16 %v1847
        %v1912 = vunpack.c.l.b16 %v1848
        %v1913 = vunpack.c.l.b16 %v1849
        %v1914 = vunpack.c.l.b16 %v1850
        %v1915 = vunpack.c.l.b16 %v1851
        %v1916 = vunpack.c.l.b16 %v1852
        %v1917 = vpack.c.b16 %v1886, %v1885
        %v1918 = vpack.c.b16 %v1888, %v1887
        %v1919 = vpack.c.b16 %v1890, %v1889
        %v1920 = vpack.c.b16 %v1892, %v1891
        %v1921 = vpack.c.b16 %v1894, %v1893
        %v1922 = vpack.c.b16 %v1896, %v1895
        %v1923 = vpack.c.b16 %v1898, %v1897
        %v1924 = vpack.c.b16 %v1900, %v1899
        %v1925 = vpack.c.b16 %v1902, %v1901
        %v1926 = vpack.c.b16 %v1904, %v1903
        %v1927 = vpack.c.b16 %v1906, %v1905
        %v1928 = vpack.c.b16 %v1908, %v1907
        %v1929 = vpack.c.b16 %v1910, %v1909
        %v1930 = vpack.c.b16 %v1912, %v1911
        %v1931 = vpack.c.b16 %v1914, %v1913
        %v1932 = vpack.c.b16 %v1916, %v1915
        %1949 = vmatprep.subr.bf16.mxu0 0
        %1950 = vmatpush1.bf16.msra.mxu0 %v1924
        %1951 = vmatprep.subr.bf16.mxu0 0
        %1952 = vmatpush1.bf16.msra.mxu0 %v1923
        %1953 = vmatprep.subr.bf16.mxu0 0
        %1954 = vmatpush1.bf16.msra.mxu0 %v1922
        %1955 = vmatprep.subr.bf16.mxu0 0
        %1956 = vmatpush1.bf16.msra.mxu0 %v1921
        %1957 = vmatprep.subr.bf16.mxu0 0
        %1958 = vmatpush1.bf16.msra.mxu0 %v1920
        %1959 = vmatprep.subr.bf16.mxu0 0
        %1960 = vmatpush1.bf16.msra.mxu0 %v1919
        %1961 = vmatprep.subr.bf16.mxu0 0
        %1962 = vmatpush1.bf16.msra.mxu0 %v1918
        %1963 = vmatprep.subr.bf16.mxu0 0
        %1964 = vmatpush1.bf16.msra.mxu0 %v1917
        %1965 = vmatprep.subr.bf16.mxu0 0
        %1966 = vmatpush2.bf16.msra.mxu0 %v1932
        %1967 = vmatprep.subr.bf16.mxu0 0
        %1968 = vmatpush2.bf16.msra.mxu0 %v1931
        %1969 = vmatprep.subr.bf16.mxu0 0
        %1970 = vmatpush2.bf16.msra.mxu0 %v1930
        %1971 = vmatprep.subr.bf16.mxu0 0
        %1972 = vmatpush2.bf16.msra.mxu0 %v1929
        %1973 = vmatprep.subr.bf16.mxu0 0
        %1974 = vmatpush2.bf16.msra.mxu0 %v1928
        %1975 = vmatprep.subr.bf16.mxu0 0
        %1976 = vmatpush2.bf16.msra.mxu0 %v1927
        %1977 = vmatprep.subr.bf16.mxu0 0
        %1978 = vmatpush2.bf16.msra.mxu0 %v1926
        %1979 = vmatprep.subr.bf16.mxu0 0
        %1980 = vmatpush2.bf16.msra.mxu0 %v1925
        %1981 = vmatprep.mubr.bf16.mxu0 %v1820
        %1982 = vmatmul.mubr.bf16.gmra.mxu0 %v1819
        %v1983 = vpop.f32.mrf.mxu0
        %v1984 = vadd.f32 0.0, %v1983
        %v1985 = vpop.f32.mrf.mxu0
        %v1986 = vpop.f32.mrf.mxu0
        %v1987 = vpop.f32.mrf.mxu0
        %1988 = vdwg.mxu0
        %v1989 = vadd.f32 %v1818, %v1984
        %1990 = vst [vmem:[#allocation2] sm:$0xff] %v1989
        %p1991 = scmp.eq.s32.totalorder %s22, 1
        // Predicated region
        $region83: #{mlp_forward.1} parent=73 // pred_check
          %p1992 = pneg %p1991
        $region84: #{mlp_forward.1} parent=73 // pred_check_branch
          %1994 = sbr.rel (%p1992) target = $region86
        $region85: #{mlp_forward.1} parent=73 // pred_region
          %v1995 = vld [vmem:[#allocation2] sm:$0xff]
          %v1996 = vld [vmem:[%s4] sm:$0x1]
          %v1998 = vlaneseq
          %v1999 = vshrl.u32 %v1998, 7
          %v2000 = vsub.s32 0, %v1999
          %v2001 = vrot.slane %v1996, %v2000
          %v2003 = vadd.f32 %v1995, %v2001
          %2004 = vst [vmem:[#allocation4] sm:$0xff] %v2003
        $region86: #{mlp_forward.1} parent=73 // pred_fallthru
          _
        // Predicated region
        $region87: #{mlp_forward.1} parent=73 // pred_check
          %p2005 = pneg %p172
        $region88: #{mlp_forward.1} parent=73 // pred_check_branch
          %2007 = sbr.rel (%p2005) target = $region90
        $region89: #{mlp_forward.1} parent=73 // pred_region
          %s2009 = ssub.s32 128, 128
          %2010 = vsyncadd [#allocation5], %s2009
          %s2011 = smul.addr %s21, 128
          %s2012 = scalar_lea.hbm %s5, %s2011
          %s2014 = sshll.u32 [#allocation4], 4
          %s2015 = int_to_ptr.vmem [resolvable:$true] %s2014
          %2017 = dma.vmem_to_hbm [thread:$0]  %s2015, 128, %s2012, [#allocation5]
        $region90: #{mlp_forward.1} parent=73 // pred_fallthru
          _
        // Predicated region
        $region91: #{mlp_forward.1} parent=73 // pred_check
          %p2018 = pneg %p172
        $region92: #{mlp_forward.1} parent=73 // pred_check_branch
          %2020 = sbr.rel (%p2018) target = $region94
        $region93: #{mlp_forward.1} parent=73 // pred_region
          %2021 = dma.done [#allocation5], 128
        $region94: #{mlp_forward.1} parent=73 // pred_fallthru
          _
      $region74: #{mlp_forward.1} parent=5 // pred_fallthru
        _
      %p2022 = scmp.le.s32.totalorder 2, %s12
      // Predicated region
      $region95: #{mlp_forward.1} parent=5 // pred_check
        %p2023 = pneg %p2022
      $region96: #{mlp_forward.1} parent=5 // pred_check_branch
        %2025 = sbr.rel (%p2023) target = $region98
      $region97: #{mlp_forward.1} parent=5 // pred_region
        %s2026 = ssub.s32 %s12, 2
      $region98: #{mlp_forward.1} parent=5 // pred_fallthru
        _
    $region6: #{mlp_forward.1} parent=1 // loop_footer
      %s16 = sadd.s32 1, %s12
    $region7: #{mlp_forward.1} parent=1 // loop_footer_branch
      %11 = sbr.rel target = $region3
    $region8: #{mlp_forward.1} parent=1 // loop_exit
      _
    %2027 = vsyncpa [#allocation5], 1
    %s2028 = scalar_lea.sflag [#allocation5], 1
    %2029 = vsyncpa %s2028, 1

</llo_original>
